<compile_context>
chip_gen: v5e
topology: v5e:2x2
jax: 0.10.0
libtpu: 0.0.40
codegen_flags: <defaults>
</compile_context>

<pallas_src>
import math

import jax
import jax.numpy as jnp
from jax import lax
from jax.experimental import pallas as pl
from jax.experimental.pallas import tpu as pltpu

# ---- hyperparameters (stand-ins for hp.*) ----
NMELS = 16        # hp.data.nmels
HIDDEN = 32       # hp.model.hidden
NUM_LAYERS = 2    # hp.model.num_layer
PROJ = 16         # hp.model.proj
N_CLASSES = 10
BATCH = 16        # total sequences
FRAMES = 8        # sequence length


def _num_tensorcores():
    """One grid program per TensorCore: v7x exposes 2 TCs/chip, v5e/v6e have 1."""
    try:
        kind = jax.devices()[0].device_kind.lower()
    except Exception:
        return 1
    return 2 if ("v7" in kind or "7x" in kind) else 1


def _speech_embedder_kernel(
    x_ref,                 # (T, TB, NMELS) f32, time-major
    wih0_ref,              # (NMELS, 4H) bf16
    whh0_ref,              # (H, 4H)     bf16
    b0_ref,                # (1, 4H)     f32   (= b_ih_l0 + b_hh_l0)
    wih1_ref,              # (H, 4H)     bf16
    whh1_ref,              # (H, 4H)     bf16
    b1_ref,                # (1, 4H)     f32   (= b_ih_l1 + b_hh_l1)
    wp_ref, bp_ref,        # (H, PROJ) f32, (1, PROJ) f32
    wc_ref, bc_ref,        # (PROJ, N_CLASSES) f32, (1, N_CLASSES) f32
    pred_ref,              # (TB, N_CLASSES) f32
    hn_ref,                # (NUM_LAYERS, TB, H) f32
    cn_ref,                # (NUM_LAYERS, TB, H) f32
):
    T, B, NM = x_ref.shape
    H = whh0_ref.shape[0]
    G = 4 * H
    bf16 = jnp.bfloat16

    # ---- hoisted layer-0 input projection: one (T*B, NM) x (NM, 4H) bf16 MXU matmul with
    #      the layer-0 bias folded in.  Kept as a value (<= 16 vregs): no VMEM round-trip,
    #      and xw0[t] below is a static whole-vreg slab per step.
    x_all = x_ref[...].reshape(T * B, NM).astype(bf16)
    xw0 = (
        jnp.dot(x_all, wih0_ref[...], preferred_element_type=jnp.float32)
        + b0_ref[...]
    ).reshape(T, B, G)

    whh0 = whh0_ref[...]
    wih1 = wih1_ref[...]
    whh1 = whh1_ref[...]
    b1 = b1_ref[...]                       # (1, 4H); broadcast happens on the early partial

    def lstm_gates(g, c_prev):
        # two full-tile EUP passes (sigmoid + tanh) instead of four sliced ones;
        # PyTorch gate order (i, f, g, o).
        sig = jax.nn.sigmoid(g)
        th = jnp.tanh(g)
        c_new = sig[:, H:2 * H] * c_prev + sig[:, :H] * th[:, 2 * H:3 * H]
        h_new = sig[:, 3 * H:] * jnp.tanh(c_new)
        return h_new, c_new

    def l0_step(t, h0, c0):
        # only the recurrent matmul stays on the serial path (input proj hoisted above)
        g0 = xw0[t] + jnp.dot(h0.astype(bf16), whh0,
                              preferred_element_type=jnp.float32)
        return lstm_gates(g0, c0)

    def l1_step(h0_t, h1, c1):
        # dot(h1_prev, whh1) + b1 depends only on the previous step -> schedules early
        p1 = jnp.dot(h1.astype(bf16), whh1,
                     preferred_element_type=jnp.float32) + b1
        g1 = jnp.dot(h0_t.astype(bf16), wih1,
                     preferred_element_type=jnp.float32) + p1
        return lstm_gates(g1, c1)

    z = jnp.zeros((B, H), jnp.float32)

    # ---- wavefront-skewed recurrence: layer-0 runs one step ahead of layer-1, so within
    #      every unrolled iteration L0(t) and L1(t-1) are independent and overlap on MXU/EUP.
    h0, c0 = l0_step(0, z, z)              # layer-0, step 0
    h1, c1 = z, z
    for t in range(1, T):                  # fully unrolled (T = 8), static xw0[t] slices
        h0_next, c0_next = l0_step(t, h0, c0)      # layer-0, step t
        h1, c1 = l1_step(h0, h1, c1)               # layer-1, step t-1 (uses h0_{t-1})
        h0, c0 = h0_next, c0_next
    h1, c1 = l1_step(h0, h1, c1)           # layer-1, last step

    hn_ref[0] = h0
    hn_ref[1] = h1
    cn_ref[0] = c0
    cn_ref[1] = c1

    # ---- projection -> L2 normalize (rsqrt on EUP, eps-guarded) -> classifier.
    #      Runs once; tiny matmuls, kept in f32.
    proj = jnp.dot(h1, wp_ref[...], preferred_element_type=jnp.float32) + bp_ref[...]
    inv_norm = lax.rsqrt(jnp.sum(proj * proj, axis=1, keepdims=True) + 1e-12)
    normed = proj * inv_norm
    # N_CLASSES=10 < 128 lanes -> one masked store; written once, acceptable.
    pred_ref[...] = (
        jnp.dot(normed, wc_ref[...], preferred_element_type=jnp.float32) + bc_ref[...]
    )


def speech_embedder_forward(x, params, *, num_programs=None):
    """x: (B, nmels, T) like the PyTorch module input.  Returns (pred, (h_n, c_n))."""
    B, nmels, T = x.shape
    if num_programs is None:
        num_programs = _num_tensorcores()
    if B % (8 * num_programs) != 0:          # keep the batch tile a multiple of 8 sublanes
        num_programs = 1
    TB = B // num_programs
    assert TB % 8 == 0, "per-program batch tile must be a multiple of 8 sublanes"

    xt = jnp.transpose(x, (2, 0, 1)).astype(jnp.float32)   # (T, B, nmels), time-major
    bf16 = jnp.bfloat16

    full2d = lambda i: (0, 0)
    grid_spec = pltpu.PrefetchScalarGridSpec(
        num_scalar_prefetch=0,
        grid=(num_programs,),                # 1 program on v5e/v6e, 2 on dual-TC v7x
        in_specs=[
            pl.BlockSpec((T, TB, nmels), lambda i: (0, i, 0)),
            pl.BlockSpec((NMELS, 4 * HIDDEN), full2d),
            pl.BlockSpec((HIDDEN, 4 * HIDDEN), full2d),
            pl.BlockSpec((1, 4 * HIDDEN), full2d),
            pl.BlockSpec((HIDDEN, 4 * HIDDEN), full2d),
            pl.BlockSpec((HIDDEN, 4 * HIDDEN), full2d),
            pl.BlockSpec((1, 4 * HIDDEN), full2d),
            pl.BlockSpec((HIDDEN, PROJ), full2d),
            pl.BlockSpec((1, PROJ), full2d),
            pl.BlockSpec((PROJ, N_CLASSES), full2d),
            pl.BlockSpec((1, N_CLASSES), full2d),
        ],
        out_specs=(
            pl.BlockSpec((TB, N_CLASSES), lambda i: (i, 0)),
            pl.BlockSpec((NUM_LAYERS, TB, HIDDEN), lambda i: (0, i, 0)),
            pl.BlockSpec((NUM_LAYERS, TB, HIDDEN), lambda i: (0, i, 0)),
        ),
    )

    pred, hn, cn = pl.pallas_call(
        _speech_embedder_kernel,
        out_shape=(
            jax.ShapeDtypeStruct((B, N_CLASSES), jnp.float32),
            jax.ShapeDtypeStruct((NUM_LAYERS, B, HIDDEN), jnp.float32),
            jax.ShapeDtypeStruct((NUM_LAYERS, B, HIDDEN), jnp.float32),
        ),
        grid_spec=grid_spec,
        compiler_params=pltpu.CompilerParams(
            dimension_semantics=("parallel",)),
    )(
        xt,
        params["wih0"].astype(bf16), params["whh0"].astype(bf16), params["b0"],
        params["wih1"].astype(bf16), params["whh1"].astype(bf16), params["b1"],
        params["wp"], params["bp"],
        params["wc"], params["bc"],
    )
    return pred, (hn, cn)


def init_params(key):
    """Deterministic parameter init (xavier_normal weights, zero LSTM biases)."""
    ks = jax.random.split(key, 8)

    def xavier(k, shape):  # shape = (out, in) as in torch
        fan_out, fan_in = shape
        std = math.sqrt(2.0 / (fan_in + fan_out))
        return (std * jax.random.normal(k, shape)).astype(jnp.float32)

    H = HIDDEN
    w_ih_l0 = xavier(ks[0], (4 * H, NMELS))
    w_hh_l0 = xavier(ks[1], (4 * H, H))
    w_ih_l1 = xavier(ks[2], (4 * H, H))
    w_hh_l1 = xavier(ks[3], (4 * H, H))
    # nn.init.constant_(bias, 0.0)  ->  b_ih + b_hh = 0 (callers with real torch weights
    # must sum the two bias vectors into these combined biases).
    b0 = jnp.zeros((1, 4 * H), jnp.float32)
    b1 = jnp.zeros((1, 4 * H), jnp.float32)

    w_proj = xavier(ks[4], (PROJ, H))
    b_proj = (0.01 * jax.random.normal(ks[5], (PROJ,))).astype(jnp.float32)
    w_cls = xavier(ks[6], (N_CLASSES, PROJ))
    b_cls = (0.01 * jax.random.normal(ks[7], (N_CLASSES,))).astype(jnp.float32)

    return dict(
        wih0=w_ih_l0.T, whh0=w_hh_l0.T, b0=b0,
        wih1=w_ih_l1.T, whh1=w_hh_l1.T, b1=b1,
        wp=w_proj.T, bp=b_proj[None, :],
        wc=w_cls.T, bc=b_cls[None, :],
    )


def reference_forward(x, p):
    """Pure-JAX f32 reference matching the PyTorch forward semantics."""
    xt = jnp.transpose(x, (0, 2, 1)).astype(jnp.float32)  # (B, T, nmels)
    B, T, _ = xt.shape
    H = HIDDEN
    seq = xt
    hs, cs = [], []
    for wih, whh, b in [(p["wih0"], p["whh0"], p["b0"]),
                        (p["wih1"], p["whh1"], p["b1"])]:
        h = jnp.zeros((B, H), jnp.float32)
        c = jnp.zeros((B, H), jnp.float32)
        outs = []
        for t in range(T):
            gates = seq[:, t, :] @ wih + h @ whh + b
            i_g = jax.nn.sigmoid(gates[:, :H])
            f_g = jax.nn.sigmoid(gates[:, H:2 * H])
            g_g = jnp.tanh(gates[:, 2 * H:3 * H])
            o_g = jax.nn.sigmoid(gates[:, 3 * H:])
            c = f_g * c + i_g * g_g
            h = o_g * jnp.tanh(c)
            outs.append(h)
        seq = jnp.stack(outs, axis=1)
        hs.append(h)
        cs.append(c)
    last = seq[:, -1, :]
    proj = last @ p["wp"] + p["bp"]
    normed = proj / jnp.linalg.norm(proj, axis=1, keepdims=True)
    pred = normed @ p["wc"] + p["bc"]
    return pred, (jnp.stack(hs), jnp.stack(cs))


if __name__ == "__main__":
    import numpy as np

    key = jax.random.PRNGKey(0)
    pk, xk = jax.random.split(key)
    params = init_params(pk)
    x = jax.random.normal(xk, (BATCH, NMELS, FRAMES), jnp.float32)

    pred, (hn, cn) = speech_embedder_forward(x, params)
    jax.block_until_ready((pred, hn, cn))

    ref_pred, (ref_hn, ref_cn) = reference_forward(x, params)
    # Kernel uses bf16 MXU operands on the recurrent path (f32 accumulate / gate math),
    # so compare against the pure-f32 reference with a correspondingly relaxed tolerance.
    assert np.allclose(np.asarray(pred), np.asarray(ref_pred), atol=2e-2, rtol=2e-2)
    assert np.allclose(np.asarray(hn), np.asarray(ref_hn), atol=2e-2, rtol=2e-2)
    assert np.allclose(np.asarray(cn), np.asarray(ref_cn), atol=2e-2, rtol=2e-2)
    print("KERNEL_OK")
</pallas_src>

<mosaic_0001>
module attributes {stable_mosaic.version = 11 : i64} {
  func.func @_speech_embedder_kernel(%arg0: i32, %arg1: memref<8x16x16xf32, #tpu.memory_space<vmem>>, %arg2: memref<16x128xbf16, #tpu.memory_space<vmem>>, %arg3: memref<32x128xbf16, #tpu.memory_space<vmem>>, %arg4: memref<1x128xf32, #tpu.memory_space<vmem>>, %arg5: memref<32x128xbf16, #tpu.memory_space<vmem>>, %arg6: memref<32x128xbf16, #tpu.memory_space<vmem>>, %arg7: memref<1x128xf32, #tpu.memory_space<vmem>>, %arg8: memref<32x16xf32, #tpu.memory_space<vmem>>, %arg9: memref<1x16xf32, #tpu.memory_space<vmem>>, %arg10: memref<16x10xf32, #tpu.memory_space<vmem>>, %arg11: memref<1x10xf32, #tpu.memory_space<vmem>>, %arg12: memref<16x10xf32, #tpu.memory_space<vmem>>, %arg13: memref<2x16x32xf32, #tpu.memory_space<vmem>>, %arg14: memref<2x16x32xf32, #tpu.memory_space<vmem>>) attributes {dimension_semantics = [#tpu.dimension_semantics<parallel>], iteration_bounds = array<i64: 1>, scalar_prefetch = 0 : i64, scratch_operands = 0 : i64, tpu.core_type = #tpu.core_type<tc>, window_params = [{transform_indices = @transform_0, window_bounds = array<i64: 8, 16, 16>}, {pipeline_mode = #tpu.pipeline_mode<synchronous>, transform_indices = @transform_1, window_bounds = array<i64: 16, 128>}, {pipeline_mode = #tpu.pipeline_mode<synchronous>, transform_indices = @transform_2, window_bounds = array<i64: 32, 128>}, {pipeline_mode = #tpu.pipeline_mode<synchronous>, transform_indices = @transform_3, window_bounds = array<i64: 1, 128>}, {pipeline_mode = #tpu.pipeline_mode<synchronous>, transform_indices = @transform_4, window_bounds = array<i64: 32, 128>}, {pipeline_mode = #tpu.pipeline_mode<synchronous>, transform_indices = @transform_5, window_bounds = array<i64: 32, 128>}, {pipeline_mode = #tpu.pipeline_mode<synchronous>, transform_indices = @transform_6, window_bounds = array<i64: 1, 128>}, {pipeline_mode = #tpu.pipeline_mode<synchronous>, transform_indices = @transform_7, window_bounds = array<i64: 32, 16>}, {pipeline_mode = #tpu.pipeline_mode<synchronous>, transform_indices = @transform_8, window_bounds = array<i64: 1, 16>}, {pipeline_mode = #tpu.pipeline_mode<synchronous>, transform_indices = @transform_9, window_bounds = array<i64: 16, 10>}, {pipeline_mode = #tpu.pipeline_mode<synchronous>, transform_indices = @transform_10, window_bounds = array<i64: 1, 10>}, {transform_indices = @transform_11, window_bounds = array<i64: 16, 10>}, {transform_indices = @transform_12, window_bounds = array<i64: 2, 16, 32>}, {transform_indices = @transform_13, window_bounds = array<i64: 2, 16, 32>}]} {
    %c0 = arith.constant 0 : index
    %c0_0 = arith.constant 0 : index
    %c0_1 = arith.constant 0 : index
    %0 = vector.load %arg1[%c0, %c0_0, %c0_1] : memref<8x16x16xf32, #tpu.memory_space<vmem>>, vector<8x16x16xf32>
    %1 = vector.shape_cast %0 : vector<8x16x16xf32> to vector<128x16xf32>
    %2 = arith.truncf %1 : vector<128x16xf32> to vector<128x16xbf16>
    %c0_2 = arith.constant 0 : index
    %c0_3 = arith.constant 0 : index
    %3 = vector.load %arg2[%c0_2, %c0_3] : memref<16x128xbf16, #tpu.memory_space<vmem>>, vector<16x128xbf16>
    %cst = arith.constant dense<0.000000e+00> : vector<128x128xf32>
    %4 = tpu.matmul %2, %3, %cst {dimension_numbers = #tpu.dot_dimension_numbers<[1], [0], [0], [1], [0, 0, 1, 1], [], []>} : vector<128x16xbf16>, vector<16x128xbf16>, vector<128x128xf32> -> vector<128x128xf32>
    %c0_4 = arith.constant 0 : index
    %c0_5 = arith.constant 0 : index
    %5 = vector.load %arg4[%c0_4, %c0_5] : memref<1x128xf32, #tpu.memory_space<vmem>>, vector<1x128xf32>
    %6 = vector.broadcast %5 : vector<1x128xf32> to vector<128x128xf32>
    %7 = arith.addf %4, %6 : vector<128x128xf32>
    %8 = vector.shape_cast %7 : vector<128x128xf32> to vector<8x16x128xf32>
    %c0_6 = arith.constant 0 : index
    %c0_7 = arith.constant 0 : index
    %9 = vector.load %arg3[%c0_6, %c0_7] : memref<32x128xbf16, #tpu.memory_space<vmem>>, vector<32x128xbf16>
    %c0_8 = arith.constant 0 : index
    %c0_9 = arith.constant 0 : index
    %10 = vector.load %arg5[%c0_8, %c0_9] : memref<32x128xbf16, #tpu.memory_space<vmem>>, vector<32x128xbf16>
    %c0_10 = arith.constant 0 : index
    %c0_11 = arith.constant 0 : index
    %11 = vector.load %arg6[%c0_10, %c0_11] : memref<32x128xbf16, #tpu.memory_space<vmem>>, vector<32x128xbf16>
    %c0_12 = arith.constant 0 : index
    %c0_13 = arith.constant 0 : index
    %12 = vector.load %arg7[%c0_12, %c0_13] : memref<1x128xf32, #tpu.memory_space<vmem>>, vector<1x128xf32>
    %cst_14 = arith.constant 0.000000e+00 : f32
    %13 = vector.broadcast %cst_14 : f32 to vector<16x32xf32>
    %14 = vector.extract_strided_slice %8 {offsets = [0, 0, 0], sizes = [1, 16, 128], strides = [1, 1, 1]} : vector<8x16x128xf32> to vector<1x16x128xf32>
    %15 = vector.shape_cast %14 : vector<1x16x128xf32> to vector<16x128xf32>
    %16 = arith.truncf %13 : vector<16x32xf32> to vector<16x32xbf16>
    %cst_15 = arith.constant dense<0.000000e+00> : vector<16x128xf32>
    %17 = tpu.matmul %16, %9, %cst_15 {dimension_numbers = #tpu.dot_dimension_numbers<[1], [0], [0], [1], [0, 0, 1, 1], [], []>} : vector<16x32xbf16>, vector<32x128xbf16>, vector<16x128xf32> -> vector<16x128xf32>
    %18 = arith.addf %15, %17 : vector<16x128xf32>
    %19 = arith.negf %18 : vector<16x128xf32>
    %20 = math.exp %19 : vector<16x128xf32>
    %cst_16 = arith.constant 1.000000e+00 : f32
    %21 = vector.broadcast %cst_16 : f32 to vector<16x128xf32>
    %22 = arith.addf %21, %20 : vector<16x128xf32>
    %23 = arith.divf %21, %22 : vector<16x128xf32>
    %24 = math.tanh %18 : vector<16x128xf32>
    %25 = vector.extract_strided_slice %23 {offsets = [0, 32], sizes = [16, 32], strides = [1, 1]} : vector<16x128xf32> to vector<16x32xf32>
    %26 = arith.mulf %25, %13 : vector<16x32xf32>
    %27 = vector.extract_strided_slice %23 {offsets = [0, 0], sizes = [16, 32], strides = [1, 1]} : vector<16x128xf32> to vector<16x32xf32>
    %28 = vector.extract_strided_slice %24 {offsets = [0, 64], sizes = [16, 32], strides = [1, 1]} : vector<16x128xf32> to vector<16x32xf32>
    %29 = arith.mulf %27, %28 : vector<16x32xf32>
    %30 = arith.addf %26, %29 : vector<16x32xf32>
    %31 = vector.extract_strided_slice %23 {offsets = [0, 96], sizes = [16, 32], strides = [1, 1]} : vector<16x128xf32> to vector<16x32xf32>
    %32 = math.tanh %30 : vector<16x32xf32>
    %33 = arith.mulf %31, %32 : vector<16x32xf32>
    %34 = vector.extract_strided_slice %8 {offsets = [1, 0, 0], sizes = [1, 16, 128], strides = [1, 1, 1]} : vector<8x16x128xf32> to vector<1x16x128xf32>
    %35 = vector.shape_cast %34 : vector<1x16x128xf32> to vector<16x128xf32>
    %36 = arith.truncf %33 : vector<16x32xf32> to vector<16x32xbf16>
    %cst_17 = arith.constant dense<0.000000e+00> : vector<16x128xf32>
    %37 = tpu.matmul %36, %9, %cst_17 {dimension_numbers = #tpu.dot_dimension_numbers<[1], [0], [0], [1], [0, 0, 1, 1], [], []>} : vector<16x32xbf16>, vector<32x128xbf16>, vector<16x128xf32> -> vector<16x128xf32>
    %38 = arith.addf %35, %37 : vector<16x128xf32>
    %39 = arith.negf %38 : vector<16x128xf32>
    %40 = math.exp %39 : vector<16x128xf32>
    %cst_18 = arith.constant 1.000000e+00 : f32
    %41 = vector.broadcast %cst_18 : f32 to vector<16x128xf32>
    %42 = arith.addf %41, %40 : vector<16x128xf32>
    %43 = arith.divf %41, %42 : vector<16x128xf32>
    %44 = math.tanh %38 : vector<16x128xf32>
    %45 = vector.extract_strided_slice %43 {offsets = [0, 32], sizes = [16, 32], strides = [1, 1]} : vector<16x128xf32> to vector<16x32xf32>
    %46 = arith.mulf %45, %30 : vector<16x32xf32>
    %47 = vector.extract_strided_slice %43 {offsets = [0, 0], sizes = [16, 32], strides = [1, 1]} : vector<16x128xf32> to vector<16x32xf32>
    %48 = vector.extract_strided_slice %44 {offsets = [0, 64], sizes = [16, 32], strides = [1, 1]} : vector<16x128xf32> to vector<16x32xf32>
    %49 = arith.mulf %47, %48 : vector<16x32xf32>
    %50 = arith.addf %46, %49 : vector<16x32xf32>
    %51 = vector.extract_strided_slice %43 {offsets = [0, 96], sizes = [16, 32], strides = [1, 1]} : vector<16x128xf32> to vector<16x32xf32>
    %52 = math.tanh %50 : vector<16x32xf32>
    %53 = arith.mulf %51, %52 : vector<16x32xf32>
    %54 = arith.truncf %13 : vector<16x32xf32> to vector<16x32xbf16>
    %cst_19 = arith.constant dense<0.000000e+00> : vector<16x128xf32>
    %55 = tpu.matmul %54, %11, %cst_19 {dimension_numbers = #tpu.dot_dimension_numbers<[1], [0], [0], [1], [0, 0, 1, 1], [], []>} : vector<16x32xbf16>, vector<32x128xbf16>, vector<16x128xf32> -> vector<16x128xf32>
    %56 = vector.broadcast %12 : vector<1x128xf32> to vector<16x128xf32>
    %57 = arith.addf %55, %56 : vector<16x128xf32>
    %58 = arith.truncf %33 : vector<16x32xf32> to vector<16x32xbf16>
    %cst_20 = arith.constant dense<0.000000e+00> : vector<16x128xf32>
    %59 = tpu.matmul %58, %10, %cst_20 {dimension_numbers = #tpu.dot_dimension_numbers<[1], [0], [0], [1], [0, 0, 1, 1], [], []>} : vector<16x32xbf16>, vector<32x128xbf16>, vector<16x128xf32> -> vector<16x128xf32>
    %60 = arith.addf %59, %57 : vector<16x128xf32>
    %61 = arith.negf %60 : vector<16x128xf32>
    %62 = math.exp %61 : vector<16x128xf32>
    %cst_21 = arith.constant 1.000000e+00 : f32
    %63 = vector.broadcast %cst_21 : f32 to vector<16x128xf32>
    %64 = arith.addf %63, %62 : vector<16x128xf32>
    %65 = arith.divf %63, %64 : vector<16x128xf32>
    %66 = math.tanh %60 : vector<16x128xf32>
    %67 = vector.extract_strided_slice %65 {offsets = [0, 32], sizes = [16, 32], strides = [1, 1]} : vector<16x128xf32> to vector<16x32xf32>
    %68 = arith.mulf %67, %13 : vector<16x32xf32>
    %69 = vector.extract_strided_slice %65 {offsets = [0, 0], sizes = [16, 32], strides = [1, 1]} : vector<16x128xf32> to vector<16x32xf32>
    %70 = vector.extract_strided_slice %66 {offsets = [0, 64], sizes = [16, 32], strides = [1, 1]} : vector<16x128xf32> to vector<16x32xf32>
    %71 = arith.mulf %69, %70 : vector<16x32xf32>
    %72 = arith.addf %68, %71 : vector<16x32xf32>
    %73 = vector.extract_strided_slice %65 {offsets = [0, 96], sizes = [16, 32], strides = [1, 1]} : vector<16x128xf32> to vector<16x32xf32>
    %74 = math.tanh %72 : vector<16x32xf32>
    %75 = arith.mulf %73, %74 : vector<16x32xf32>
    %76 = vector.extract_strided_slice %8 {offsets = [2, 0, 0], sizes = [1, 16, 128], strides = [1, 1, 1]} : vector<8x16x128xf32> to vector<1x16x128xf32>
    %77 = vector.shape_cast %76 : vector<1x16x128xf32> to vector<16x128xf32>
    %78 = arith.truncf %53 : vector<16x32xf32> to vector<16x32xbf16>
    %cst_22 = arith.constant dense<0.000000e+00> : vector<16x128xf32>
    %79 = tpu.matmul %78, %9, %cst_22 {dimension_numbers = #tpu.dot_dimension_numbers<[1], [0], [0], [1], [0, 0, 1, 1], [], []>} : vector<16x32xbf16>, vector<32x128xbf16>, vector<16x128xf32> -> vector<16x128xf32>
    %80 = arith.addf %77, %79 : vector<16x128xf32>
    %81 = arith.negf %80 : vector<16x128xf32>
    %82 = math.exp %81 : vector<16x128xf32>
    %cst_23 = arith.constant 1.000000e+00 : f32
    %83 = vector.broadcast %cst_23 : f32 to vector<16x128xf32>
    %84 = arith.addf %83, %82 : vector<16x128xf32>
    %85 = arith.divf %83, %84 : vector<16x128xf32>
    %86 = math.tanh %80 : vector<16x128xf32>
    %87 = vector.extract_strided_slice %85 {offsets = [0, 32], sizes = [16, 32], strides = [1, 1]} : vector<16x128xf32> to vector<16x32xf32>
    %88 = arith.mulf %87, %50 : vector<16x32xf32>
    %89 = vector.extract_strided_slice %85 {offsets = [0, 0], sizes = [16, 32], strides = [1, 1]} : vector<16x128xf32> to vector<16x32xf32>
    %90 = vector.extract_strided_slice %86 {offsets = [0, 64], sizes = [16, 32], strides = [1, 1]} : vector<16x128xf32> to vector<16x32xf32>
    %91 = arith.mulf %89, %90 : vector<16x32xf32>
    %92 = arith.addf %88, %91 : vector<16x32xf32>
    %93 = vector.extract_strided_slice %85 {offsets = [0, 96], sizes = [16, 32], strides = [1, 1]} : vector<16x128xf32> to vector<16x32xf32>
    %94 = math.tanh %92 : vector<16x32xf32>
    %95 = arith.mulf %93, %94 : vector<16x32xf32>
    %96 = arith.truncf %75 : vector<16x32xf32> to vector<16x32xbf16>
    %cst_24 = arith.constant dense<0.000000e+00> : vector<16x128xf32>
    %97 = tpu.matmul %96, %11, %cst_24 {dimension_numbers = #tpu.dot_dimension_numbers<[1], [0], [0], [1], [0, 0, 1, 1], [], []>} : vector<16x32xbf16>, vector<32x128xbf16>, vector<16x128xf32> -> vector<16x128xf32>
    %98 = vector.broadcast %12 : vector<1x128xf32> to vector<16x128xf32>
    %99 = arith.addf %97, %98 : vector<16x128xf32>
    %100 = arith.truncf %53 : vector<16x32xf32> to vector<16x32xbf16>
    %cst_25 = arith.constant dense<0.000000e+00> : vector<16x128xf32>
    %101 = tpu.matmul %100, %10, %cst_25 {dimension_numbers = #tpu.dot_dimension_numbers<[1], [0], [0], [1], [0, 0, 1, 1], [], []>} : vector<16x32xbf16>, vector<32x128xbf16>, vector<16x128xf32> -> vector<16x128xf32>
    %102 = arith.addf %101, %99 : vector<16x128xf32>
    %103 = arith.negf %102 : vector<16x128xf32>
    %104 = math.exp %103 : vector<16x128xf32>
    %cst_26 = arith.constant 1.000000e+00 : f32
    %105 = vector.broadcast %cst_26 : f32 to vector<16x128xf32>
    %106 = arith.addf %105, %104 : vector<16x128xf32>
    %107 = arith.divf %105, %106 : vector<16x128xf32>
    %108 = math.tanh %102 : vector<16x128xf32>
    %109 = vector.extract_strided_slice %107 {offsets = [0, 32], sizes = [16, 32], strides = [1, 1]} : vector<16x128xf32> to vector<16x32xf32>
    %110 = arith.mulf %109, %72 : vector<16x32xf32>
    %111 = vector.extract_strided_slice %107 {offsets = [0, 0], sizes = [16, 32], strides = [1, 1]} : vector<16x128xf32> to vector<16x32xf32>
    %112 = vector.extract_strided_slice %108 {offsets = [0, 64], sizes = [16, 32], strides = [1, 1]} : vector<16x128xf32> to vector<16x32xf32>
    %113 = arith.mulf %111, %112 : vector<16x32xf32>
    %114 = arith.addf %110, %113 : vector<16x32xf32>
    %115 = vector.extract_strided_slice %107 {offsets = [0, 96], sizes = [16, 32], strides = [1, 1]} : vector<16x128xf32> to vector<16x32xf32>
    %116 = math.tanh %114 : vector<16x32xf32>
    %117 = arith.mulf %115, %116 : vector<16x32xf32>
    %118 = vector.extract_strided_slice %8 {offsets = [3, 0, 0], sizes = [1, 16, 128], strides = [1, 1, 1]} : vector<8x16x128xf32> to vector<1x16x128xf32>
    %119 = vector.shape_cast %118 : vector<1x16x128xf32> to vector<16x128xf32>
    %120 = arith.truncf %95 : vector<16x32xf32> to vector<16x32xbf16>
    %cst_27 = arith.constant dense<0.000000e+00> : vector<16x128xf32>
    %121 = tpu.matmul %120, %9, %cst_27 {dimension_numbers = #tpu.dot_dimension_numbers<[1], [0], [0], [1], [0, 0, 1, 1], [], []>} : vector<16x32xbf16>, vector<32x128xbf16>, vector<16x128xf32> -> vector<16x128xf32>
    %122 = arith.addf %119, %121 : vector<16x128xf32>
    %123 = arith.negf %122 : vector<16x128xf32>
    %124 = math.exp %123 : vector<16x128xf32>
    %cst_28 = arith.constant 1.000000e+00 : f32
    %125 = vector.broadcast %cst_28 : f32 to vector<16x128xf32>
    %126 = arith.addf %125, %124 : vector<16x128xf32>
    %127 = arith.divf %125, %126 : vector<16x128xf32>
    %128 = math.tanh %122 : vector<16x128xf32>
    %129 = vector.extract_strided_slice %127 {offsets = [0, 32], sizes = [16, 32], strides = [1, 1]} : vector<16x128xf32> to vector<16x32xf32>
    %130 = arith.mulf %129, %92 : vector<16x32xf32>
    %131 = vector.extract_strided_slice %127 {offsets = [0, 0], sizes = [16, 32], strides = [1, 1]} : vector<16x128xf32> to vector<16x32xf32>
    %132 = vector.extract_strided_slice %128 {offsets = [0, 64], sizes = [16, 32], strides = [1, 1]} : vector<16x128xf32> to vector<16x32xf32>
    %133 = arith.mulf %131, %132 : vector<16x32xf32>
    %134 = arith.addf %130, %133 : vector<16x32xf32>
    %135 = vector.extract_strided_slice %127 {offsets = [0, 96], sizes = [16, 32], strides = [1, 1]} : vector<16x128xf32> to vector<16x32xf32>
    %136 = math.tanh %134 : vector<16x32xf32>
    %137 = arith.mulf %135, %136 : vector<16x32xf32>
    %138 = arith.truncf %117 : vector<16x32xf32> to vector<16x32xbf16>
    %cst_29 = arith.constant dense<0.000000e+00> : vector<16x128xf32>
    %139 = tpu.matmul %138, %11, %cst_29 {dimension_numbers = #tpu.dot_dimension_numbers<[1], [0], [0], [1], [0, 0, 1, 1], [], []>} : vector<16x32xbf16>, vector<32x128xbf16>, vector<16x128xf32> -> vector<16x128xf32>
    %140 = vector.broadcast %12 : vector<1x128xf32> to vector<16x128xf32>
    %141 = arith.addf %139, %140 : vector<16x128xf32>
    %142 = arith.truncf %95 : vector<16x32xf32> to vector<16x32xbf16>
    %cst_30 = arith.constant dense<0.000000e+00> : vector<16x128xf32>
    %143 = tpu.matmul %142, %10, %cst_30 {dimension_numbers = #tpu.dot_dimension_numbers<[1], [0], [0], [1], [0, 0, 1, 1], [], []>} : vector<16x32xbf16>, vector<32x128xbf16>, vector<16x128xf32> -> vector<16x128xf32>
    %144 = arith.addf %143, %141 : vector<16x128xf32>
    %145 = arith.negf %144 : vector<16x128xf32>
    %146 = math.exp %145 : vector<16x128xf32>
    %cst_31 = arith.constant 1.000000e+00 : f32
    %147 = vector.broadcast %cst_31 : f32 to vector<16x128xf32>
    %148 = arith.addf %147, %146 : vector<16x128xf32>
    %149 = arith.divf %147, %148 : vector<16x128xf32>
    %150 = math.tanh %144 : vector<16x128xf32>
    %151 = vector.extract_strided_slice %149 {offsets = [0, 32], sizes = [16, 32], strides = [1, 1]} : vector<16x128xf32> to vector<16x32xf32>
    %152 = arith.mulf %151, %114 : vector<16x32xf32>
    %153 = vector.extract_strided_slice %149 {offsets = [0, 0], sizes = [16, 32], strides = [1, 1]} : vector<16x128xf32> to vector<16x32xf32>
    %154 = vector.extract_strided_slice %150 {offsets = [0, 64], sizes = [16, 32], strides = [1, 1]} : vector<16x128xf32> to vector<16x32xf32>
    %155 = arith.mulf %153, %154 : vector<16x32xf32>
    %156 = arith.addf %152, %155 : vector<16x32xf32>
    %157 = vector.extract_strided_slice %149 {offsets = [0, 96], sizes = [16, 32], strides = [1, 1]} : vector<16x128xf32> to vector<16x32xf32>
    %158 = math.tanh %156 : vector<16x32xf32>
    %159 = arith.mulf %157, %158 : vector<16x32xf32>
    %160 = vector.extract_strided_slice %8 {offsets = [4, 0, 0], sizes = [1, 16, 128], strides = [1, 1, 1]} : vector<8x16x128xf32> to vector<1x16x128xf32>
    %161 = vector.shape_cast %160 : vector<1x16x128xf32> to vector<16x128xf32>
    %162 = arith.truncf %137 : vector<16x32xf32> to vector<16x32xbf16>
    %cst_32 = arith.constant dense<0.000000e+00> : vector<16x128xf32>
    %163 = tpu.matmul %162, %9, %cst_32 {dimension_numbers = #tpu.dot_dimension_numbers<[1], [0], [0], [1], [0, 0, 1, 1], [], []>} : vector<16x32xbf16>, vector<32x128xbf16>, vector<16x128xf32> -> vector<16x128xf32>
    %164 = arith.addf %161, %163 : vector<16x128xf32>
    %165 = arith.negf %164 : vector<16x128xf32>
    %166 = math.exp %165 : vector<16x128xf32>
    %cst_33 = arith.constant 1.000000e+00 : f32
    %167 = vector.broadcast %cst_33 : f32 to vector<16x128xf32>
    %168 = arith.addf %167, %166 : vector<16x128xf32>
    %169 = arith.divf %167, %168 : vector<16x128xf32>
    %170 = math.tanh %164 : vector<16x128xf32>
    %171 = vector.extract_strided_slice %169 {offsets = [0, 32], sizes = [16, 32], strides = [1, 1]} : vector<16x128xf32> to vector<16x32xf32>
    %172 = arith.mulf %171, %134 : vector<16x32xf32>
    %173 = vector.extract_strided_slice %169 {offsets = [0, 0], sizes = [16, 32], strides = [1, 1]} : vector<16x128xf32> to vector<16x32xf32>
    %174 = vector.extract_strided_slice %170 {offsets = [0, 64], sizes = [16, 32], strides = [1, 1]} : vector<16x128xf32> to vector<16x32xf32>
    %175 = arith.mulf %173, %174 : vector<16x32xf32>
    %176 = arith.addf %172, %175 : vector<16x32xf32>
    %177 = vector.extract_strided_slice %169 {offsets = [0, 96], sizes = [16, 32], strides = [1, 1]} : vector<16x128xf32> to vector<16x32xf32>
    %178 = math.tanh %176 : vector<16x32xf32>
    %179 = arith.mulf %177, %178 : vector<16x32xf32>
    %180 = arith.truncf %159 : vector<16x32xf32> to vector<16x32xbf16>
    %cst_34 = arith.constant dense<0.000000e+00> : vector<16x128xf32>
    %181 = tpu.matmul %180, %11, %cst_34 {dimension_numbers = #tpu.dot_dimension_numbers<[1], [0], [0], [1], [0, 0, 1, 1], [], []>} : vector<16x32xbf16>, vector<32x128xbf16>, vector<16x128xf32> -> vector<16x128xf32>
    %182 = vector.broadcast %12 : vector<1x128xf32> to vector<16x128xf32>
    %183 = arith.addf %181, %182 : vector<16x128xf32>
    %184 = arith.truncf %137 : vector<16x32xf32> to vector<16x32xbf16>
    %cst_35 = arith.constant dense<0.000000e+00> : vector<16x128xf32>
    %185 = tpu.matmul %184, %10, %cst_35 {dimension_numbers = #tpu.dot_dimension_numbers<[1], [0], [0], [1], [0, 0, 1, 1], [], []>} : vector<16x32xbf16>, vector<32x128xbf16>, vector<16x128xf32> -> vector<16x128xf32>
    %186 = arith.addf %185, %183 : vector<16x128xf32>
    %187 = arith.negf %186 : vector<16x128xf32>
    %188 = math.exp %187 : vector<16x128xf32>
    %cst_36 = arith.constant 1.000000e+00 : f32
    %189 = vector.broadcast %cst_36 : f32 to vector<16x128xf32>
    %190 = arith.addf %189, %188 : vector<16x128xf32>
    %191 = arith.divf %189, %190 : vector<16x128xf32>
    %192 = math.tanh %186 : vector<16x128xf32>
    %193 = vector.extract_strided_slice %191 {offsets = [0, 32], sizes = [16, 32], strides = [1, 1]} : vector<16x128xf32> to vector<16x32xf32>
    %194 = arith.mulf %193, %156 : vector<16x32xf32>
    %195 = vector.extract_strided_slice %191 {offsets = [0, 0], sizes = [16, 32], strides = [1, 1]} : vector<16x128xf32> to vector<16x32xf32>
    %196 = vector.extract_strided_slice %192 {offsets = [0, 64], sizes = [16, 32], strides = [1, 1]} : vector<16x128xf32> to vector<16x32xf32>
    %197 = arith.mulf %195, %196 : vector<16x32xf32>
    %198 = arith.addf %194, %197 : vector<16x32xf32>
    %199 = vector.extract_strided_slice %191 {offsets = [0, 96], sizes = [16, 32], strides = [1, 1]} : vector<16x128xf32> to vector<16x32xf32>
    %200 = math.tanh %198 : vector<16x32xf32>
    %201 = arith.mulf %199, %200 : vector<16x32xf32>
    %202 = vector.extract_strided_slice %8 {offsets = [5, 0, 0], sizes = [1, 16, 128], strides = [1, 1, 1]} : vector<8x16x128xf32> to vector<1x16x128xf32>
    %203 = vector.shape_cast %202 : vector<1x16x128xf32> to vector<16x128xf32>
    %204 = arith.truncf %179 : vector<16x32xf32> to vector<16x32xbf16>
    %cst_37 = arith.constant dense<0.000000e+00> : vector<16x128xf32>
    %205 = tpu.matmul %204, %9, %cst_37 {dimension_numbers = #tpu.dot_dimension_numbers<[1], [0], [0], [1], [0, 0, 1, 1], [], []>} : vector<16x32xbf16>, vector<32x128xbf16>, vector<16x128xf32> -> vector<16x128xf32>
    %206 = arith.addf %203, %205 : vector<16x128xf32>
    %207 = arith.negf %206 : vector<16x128xf32>
    %208 = math.exp %207 : vector<16x128xf32>
    %cst_38 = arith.constant 1.000000e+00 : f32
    %209 = vector.broadcast %cst_38 : f32 to vector<16x128xf32>
    %210 = arith.addf %209, %208 : vector<16x128xf32>
    %211 = arith.divf %209, %210 : vector<16x128xf32>
    %212 = math.tanh %206 : vector<16x128xf32>
    %213 = vector.extract_strided_slice %211 {offsets = [0, 32], sizes = [16, 32], strides = [1, 1]} : vector<16x128xf32> to vector<16x32xf32>
    %214 = arith.mulf %213, %176 : vector<16x32xf32>
    %215 = vector.extract_strided_slice %211 {offsets = [0, 0], sizes = [16, 32], strides = [1, 1]} : vector<16x128xf32> to vector<16x32xf32>
    %216 = vector.extract_strided_slice %212 {offsets = [0, 64], sizes = [16, 32], strides = [1, 1]} : vector<16x128xf32> to vector<16x32xf32>
    %217 = arith.mulf %215, %216 : vector<16x32xf32>
    %218 = arith.addf %214, %217 : vector<16x32xf32>
    %219 = vector.extract_strided_slice %211 {offsets = [0, 96], sizes = [16, 32], strides = [1, 1]} : vector<16x128xf32> to vector<16x32xf32>
    %220 = math.tanh %218 : vector<16x32xf32>
    %221 = arith.mulf %219, %220 : vector<16x32xf32>
    %222 = arith.truncf %201 : vector<16x32xf32> to vector<16x32xbf16>
    %cst_39 = arith.constant dense<0.000000e+00> : vector<16x128xf32>
    %223 = tpu.matmul %222, %11, %cst_39 {dimension_numbers = #tpu.dot_dimension_numbers<[1], [0], [0], [1], [0, 0, 1, 1], [], []>} : vector<16x32xbf16>, vector<32x128xbf16>, vector<16x128xf32> -> vector<16x128xf32>
    %224 = vector.broadcast %12 : vector<1x128xf32> to vector<16x128xf32>
    %225 = arith.addf %223, %224 : vector<16x128xf32>
    %226 = arith.truncf %179 : vector<16x32xf32> to vector<16x32xbf16>
    %cst_40 = arith.constant dense<0.000000e+00> : vector<16x128xf32>
    %227 = tpu.matmul %226, %10, %cst_40 {dimension_numbers = #tpu.dot_dimension_numbers<[1], [0], [0], [1], [0, 0, 1, 1], [], []>} : vector<16x32xbf16>, vector<32x128xbf16>, vector<16x128xf32> -> vector<16x128xf32>
    %228 = arith.addf %227, %225 : vector<16x128xf32>
    %229 = arith.negf %228 : vector<16x128xf32>
    %230 = math.exp %229 : vector<16x128xf32>
    %cst_41 = arith.constant 1.000000e+00 : f32
    %231 = vector.broadcast %cst_41 : f32 to vector<16x128xf32>
    %232 = arith.addf %231, %230 : vector<16x128xf32>
    %233 = arith.divf %231, %232 : vector<16x128xf32>
    %234 = math.tanh %228 : vector<16x128xf32>
    %235 = vector.extract_strided_slice %233 {offsets = [0, 32], sizes = [16, 32], strides = [1, 1]} : vector<16x128xf32> to vector<16x32xf32>
    %236 = arith.mulf %235, %198 : vector<16x32xf32>
    %237 = vector.extract_strided_slice %233 {offsets = [0, 0], sizes = [16, 32], strides = [1, 1]} : vector<16x128xf32> to vector<16x32xf32>
    %238 = vector.extract_strided_slice %234 {offsets = [0, 64], sizes = [16, 32], strides = [1, 1]} : vector<16x128xf32> to vector<16x32xf32>
    %239 = arith.mulf %237, %238 : vector<16x32xf32>
    %240 = arith.addf %236, %239 : vector<16x32xf32>
    %241 = vector.extract_strided_slice %233 {offsets = [0, 96], sizes = [16, 32], strides = [1, 1]} : vector<16x128xf32> to vector<16x32xf32>
    %242 = math.tanh %240 : vector<16x32xf32>
    %243 = arith.mulf %241, %242 : vector<16x32xf32>
    %244 = vector.extract_strided_slice %8 {offsets = [6, 0, 0], sizes = [1, 16, 128], strides = [1, 1, 1]} : vector<8x16x128xf32> to vector<1x16x128xf32>
    %245 = vector.shape_cast %244 : vector<1x16x128xf32> to vector<16x128xf32>
    %246 = arith.truncf %221 : vector<16x32xf32> to vector<16x32xbf16>
    %cst_42 = arith.constant dense<0.000000e+00> : vector<16x128xf32>
    %247 = tpu.matmul %246, %9, %cst_42 {dimension_numbers = #tpu.dot_dimension_numbers<[1], [0], [0], [1], [0, 0, 1, 1], [], []>} : vector<16x32xbf16>, vector<32x128xbf16>, vector<16x128xf32> -> vector<16x128xf32>
    %248 = arith.addf %245, %247 : vector<16x128xf32>
    %249 = arith.negf %248 : vector<16x128xf32>
    %250 = math.exp %249 : vector<16x128xf32>
    %cst_43 = arith.constant 1.000000e+00 : f32
    %251 = vector.broadcast %cst_43 : f32 to vector<16x128xf32>
    %252 = arith.addf %251, %250 : vector<16x128xf32>
    %253 = arith.divf %251, %252 : vector<16x128xf32>
    %254 = math.tanh %248 : vector<16x128xf32>
    %255 = vector.extract_strided_slice %253 {offsets = [0, 32], sizes = [16, 32], strides = [1, 1]} : vector<16x128xf32> to vector<16x32xf32>
    %256 = arith.mulf %255, %218 : vector<16x32xf32>
    %257 = vector.extract_strided_slice %253 {offsets = [0, 0], sizes = [16, 32], strides = [1, 1]} : vector<16x128xf32> to vector<16x32xf32>
    %258 = vector.extract_strided_slice %254 {offsets = [0, 64], sizes = [16, 32], strides = [1, 1]} : vector<16x128xf32> to vector<16x32xf32>
    %259 = arith.mulf %257, %258 : vector<16x32xf32>
    %260 = arith.addf %256, %259 : vector<16x32xf32>
    %261 = vector.extract_strided_slice %253 {offsets = [0, 96], sizes = [16, 32], strides = [1, 1]} : vector<16x128xf32> to vector<16x32xf32>
    %262 = math.tanh %260 : vector<16x32xf32>
    %263 = arith.mulf %261, %262 : vector<16x32xf32>
    %264 = arith.truncf %243 : vector<16x32xf32> to vector<16x32xbf16>
    %cst_44 = arith.constant dense<0.000000e+00> : vector<16x128xf32>
    %265 = tpu.matmul %264, %11, %cst_44 {dimension_numbers = #tpu.dot_dimension_numbers<[1], [0], [0], [1], [0, 0, 1, 1], [], []>} : vector<16x32xbf16>, vector<32x128xbf16>, vector<16x128xf32> -> vector<16x128xf32>
    %266 = vector.broadcast %12 : vector<1x128xf32> to vector<16x128xf32>
    %267 = arith.addf %265, %266 : vector<16x128xf32>
    %268 = arith.truncf %221 : vector<16x32xf32> to vector<16x32xbf16>
    %cst_45 = arith.constant dense<0.000000e+00> : vector<16x128xf32>
    %269 = tpu.matmul %268, %10, %cst_45 {dimension_numbers = #tpu.dot_dimension_numbers<[1], [0], [0], [1], [0, 0, 1, 1], [], []>} : vector<16x32xbf16>, vector<32x128xbf16>, vector<16x128xf32> -> vector<16x128xf32>
    %270 = arith.addf %269, %267 : vector<16x128xf32>
    %271 = arith.negf %270 : vector<16x128xf32>
    %272 = math.exp %271 : vector<16x128xf32>
    %cst_46 = arith.constant 1.000000e+00 : f32
    %273 = vector.broadcast %cst_46 : f32 to vector<16x128xf32>
    %274 = arith.addf %273, %272 : vector<16x128xf32>
    %275 = arith.divf %273, %274 : vector<16x128xf32>
    %276 = math.tanh %270 : vector<16x128xf32>
    %277 = vector.extract_strided_slice %275 {offsets = [0, 32], sizes = [16, 32], strides = [1, 1]} : vector<16x128xf32> to vector<16x32xf32>
    %278 = arith.mulf %277, %240 : vector<16x32xf32>
    %279 = vector.extract_strided_slice %275 {offsets = [0, 0], sizes = [16, 32], strides = [1, 1]} : vector<16x128xf32> to vector<16x32xf32>
    %280 = vector.extract_strided_slice %276 {offsets = [0, 64], sizes = [16, 32], strides = [1, 1]} : vector<16x128xf32> to vector<16x32xf32>
    %281 = arith.mulf %279, %280 : vector<16x32xf32>
    %282 = arith.addf %278, %281 : vector<16x32xf32>
    %283 = vector.extract_strided_slice %275 {offsets = [0, 96], sizes = [16, 32], strides = [1, 1]} : vector<16x128xf32> to vector<16x32xf32>
    %284 = math.tanh %282 : vector<16x32xf32>
    %285 = arith.mulf %283, %284 : vector<16x32xf32>
    %286 = vector.extract_strided_slice %8 {offsets = [7, 0, 0], sizes = [1, 16, 128], strides = [1, 1, 1]} : vector<8x16x128xf32> to vector<1x16x128xf32>
    %287 = vector.shape_cast %286 : vector<1x16x128xf32> to vector<16x128xf32>
    %288 = arith.truncf %263 : vector<16x32xf32> to vector<16x32xbf16>
    %cst_47 = arith.constant dense<0.000000e+00> : vector<16x128xf32>
    %289 = tpu.matmul %288, %9, %cst_47 {dimension_numbers = #tpu.dot_dimension_numbers<[1], [0], [0], [1], [0, 0, 1, 1], [], []>} : vector<16x32xbf16>, vector<32x128xbf16>, vector<16x128xf32> -> vector<16x128xf32>
    %290 = arith.addf %287, %289 : vector<16x128xf32>
    %291 = arith.negf %290 : vector<16x128xf32>
    %292 = math.exp %291 : vector<16x128xf32>
    %cst_48 = arith.constant 1.000000e+00 : f32
    %293 = vector.broadcast %cst_48 : f32 to vector<16x128xf32>
    %294 = arith.addf %293, %292 : vector<16x128xf32>
    %295 = arith.divf %293, %294 : vector<16x128xf32>
    %296 = math.tanh %290 : vector<16x128xf32>
    %297 = vector.extract_strided_slice %295 {offsets = [0, 32], sizes = [16, 32], strides = [1, 1]} : vector<16x128xf32> to vector<16x32xf32>
    %298 = arith.mulf %297, %260 : vector<16x32xf32>
    %299 = vector.extract_strided_slice %295 {offsets = [0, 0], sizes = [16, 32], strides = [1, 1]} : vector<16x128xf32> to vector<16x32xf32>
    %300 = vector.extract_strided_slice %296 {offsets = [0, 64], sizes = [16, 32], strides = [1, 1]} : vector<16x128xf32> to vector<16x32xf32>
    %301 = arith.mulf %299, %300 : vector<16x32xf32>
    %302 = arith.addf %298, %301 : vector<16x32xf32>
    %303 = vector.extract_strided_slice %295 {offsets = [0, 96], sizes = [16, 32], strides = [1, 1]} : vector<16x128xf32> to vector<16x32xf32>
    %304 = math.tanh %302 : vector<16x32xf32>
    %305 = arith.mulf %303, %304 : vector<16x32xf32>
    %306 = arith.truncf %285 : vector<16x32xf32> to vector<16x32xbf16>
    %cst_49 = arith.constant dense<0.000000e+00> : vector<16x128xf32>
    %307 = tpu.matmul %306, %11, %cst_49 {dimension_numbers = #tpu.dot_dimension_numbers<[1], [0], [0], [1], [0, 0, 1, 1], [], []>} : vector<16x32xbf16>, vector<32x128xbf16>, vector<16x128xf32> -> vector<16x128xf32>
    %308 = vector.broadcast %12 : vector<1x128xf32> to vector<16x128xf32>
    %309 = arith.addf %307, %308 : vector<16x128xf32>
    %310 = arith.truncf %263 : vector<16x32xf32> to vector<16x32xbf16>
    %cst_50 = arith.constant dense<0.000000e+00> : vector<16x128xf32>
    %311 = tpu.matmul %310, %10, %cst_50 {dimension_numbers = #tpu.dot_dimension_numbers<[1], [0], [0], [1], [0, 0, 1, 1], [], []>} : vector<16x32xbf16>, vector<32x128xbf16>, vector<16x128xf32> -> vector<16x128xf32>
    %312 = arith.addf %311, %309 : vector<16x128xf32>
    %313 = arith.negf %312 : vector<16x128xf32>
    %314 = math.exp %313 : vector<16x128xf32>
    %cst_51 = arith.constant 1.000000e+00 : f32
    %315 = vector.broadcast %cst_51 : f32 to vector<16x128xf32>
    %316 = arith.addf %315, %314 : vector<16x128xf32>
    %317 = arith.divf %315, %316 : vector<16x128xf32>
    %318 = math.tanh %312 : vector<16x128xf32>
    %319 = vector.extract_strided_slice %317 {offsets = [0, 32], sizes = [16, 32], strides = [1, 1]} : vector<16x128xf32> to vector<16x32xf32>
    %320 = arith.mulf %319, %282 : vector<16x32xf32>
    %321 = vector.extract_strided_slice %317 {offsets = [0, 0], sizes = [16, 32], strides = [1, 1]} : vector<16x128xf32> to vector<16x32xf32>
    %322 = vector.extract_strided_slice %318 {offsets = [0, 64], sizes = [16, 32], strides = [1, 1]} : vector<16x128xf32> to vector<16x32xf32>
    %323 = arith.mulf %321, %322 : vector<16x32xf32>
    %324 = arith.addf %320, %323 : vector<16x32xf32>
    %325 = vector.extract_strided_slice %317 {offsets = [0, 96], sizes = [16, 32], strides = [1, 1]} : vector<16x128xf32> to vector<16x32xf32>
    %326 = math.tanh %324 : vector<16x32xf32>
    %327 = arith.mulf %325, %326 : vector<16x32xf32>
    %328 = arith.truncf %327 : vector<16x32xf32> to vector<16x32xbf16>
    %cst_52 = arith.constant dense<0.000000e+00> : vector<16x128xf32>
    %329 = tpu.matmul %328, %11, %cst_52 {dimension_numbers = #tpu.dot_dimension_numbers<[1], [0], [0], [1], [0, 0, 1, 1], [], []>} : vector<16x32xbf16>, vector<32x128xbf16>, vector<16x128xf32> -> vector<16x128xf32>
    %330 = vector.broadcast %12 : vector<1x128xf32> to vector<16x128xf32>
    %331 = arith.addf %329, %330 : vector<16x128xf32>
    %332 = arith.truncf %305 : vector<16x32xf32> to vector<16x32xbf16>
    %cst_53 = arith.constant dense<0.000000e+00> : vector<16x128xf32>
    %333 = tpu.matmul %332, %10, %cst_53 {dimension_numbers = #tpu.dot_dimension_numbers<[1], [0], [0], [1], [0, 0, 1, 1], [], []>} : vector<16x32xbf16>, vector<32x128xbf16>, vector<16x128xf32> -> vector<16x128xf32>
    %334 = arith.addf %333, %331 : vector<16x128xf32>
    %335 = arith.negf %334 : vector<16x128xf32>
    %336 = math.exp %335 : vector<16x128xf32>
    %cst_54 = arith.constant 1.000000e+00 : f32
    %337 = vector.broadcast %cst_54 : f32 to vector<16x128xf32>
    %338 = arith.addf %337, %336 : vector<16x128xf32>
    %339 = arith.divf %337, %338 : vector<16x128xf32>
    %340 = math.tanh %334 : vector<16x128xf32>
    %341 = vector.extract_strided_slice %339 {offsets = [0, 32], sizes = [16, 32], strides = [1, 1]} : vector<16x128xf32> to vector<16x32xf32>
    %342 = arith.mulf %341, %324 : vector<16x32xf32>
    %343 = vector.extract_strided_slice %339 {offsets = [0, 0], sizes = [16, 32], strides = [1, 1]} : vector<16x128xf32> to vector<16x32xf32>
    %344 = vector.extract_strided_slice %340 {offsets = [0, 64], sizes = [16, 32], strides = [1, 1]} : vector<16x128xf32> to vector<16x32xf32>
    %345 = arith.mulf %343, %344 : vector<16x32xf32>
    %346 = arith.addf %342, %345 : vector<16x32xf32>
    %347 = vector.extract_strided_slice %339 {offsets = [0, 96], sizes = [16, 32], strides = [1, 1]} : vector<16x128xf32> to vector<16x32xf32>
    %348 = math.tanh %346 : vector<16x32xf32>
    %349 = arith.mulf %347, %348 : vector<16x32xf32>
    %c0_55 = arith.constant 0 : index
    %c0_56 = arith.constant 0 : index
    %c0_57 = arith.constant 0 : index
    %350 = vector.load %arg13[%c0_55, %c0_56, %c0_57] : memref<2x16x32xf32, #tpu.memory_space<vmem>>, vector<1x16x32xf32>
    %351 = vector.shape_cast %350 : vector<1x16x32xf32> to vector<16x32xf32>
    %352 = vector.shape_cast %305 : vector<16x32xf32> to vector<1x16x32xf32>
    tpu.vector_store %arg13[%c0_55, %c0_56, %c0_57], %352 {strides = array<i32>} : memref<2x16x32xf32, #tpu.memory_space<vmem>>, vector<1x16x32xf32>,
    %c1 = arith.constant 1 : index
    %c0_58 = arith.constant 0 : index
    %c0_59 = arith.constant 0 : index
    %353 = vector.load %arg13[%c1, %c0_58, %c0_59] : memref<2x16x32xf32, #tpu.memory_space<vmem>>, vector<1x16x32xf32>
    %354 = vector.shape_cast %353 : vector<1x16x32xf32> to vector<16x32xf32>
    %355 = vector.shape_cast %349 : vector<16x32xf32> to vector<1x16x32xf32>
    tpu.vector_store %arg13[%c1, %c0_58, %c0_59], %355 {strides = array<i32>} : memref<2x16x32xf32, #tpu.memory_space<vmem>>, vector<1x16x32xf32>,
    %c0_60 = arith.constant 0 : index
    %c0_61 = arith.constant 0 : index
    %c0_62 = arith.constant 0 : index
    %356 = vector.load %arg14[%c0_60, %c0_61, %c0_62] : memref<2x16x32xf32, #tpu.memory_space<vmem>>, vector<1x16x32xf32>
    %357 = vector.shape_cast %356 : vector<1x16x32xf32> to vector<16x32xf32>
    %358 = vector.shape_cast %302 : vector<16x32xf32> to vector<1x16x32xf32>
    tpu.vector_store %arg14[%c0_60, %c0_61, %c0_62], %358 {strides = array<i32>} : memref<2x16x32xf32, #tpu.memory_space<vmem>>, vector<1x16x32xf32>,
    %c1_63 = arith.constant 1 : index
    %c0_64 = arith.constant 0 : index
    %c0_65 = arith.constant 0 : index
    %359 = vector.load %arg14[%c1_63, %c0_64, %c0_65] : memref<2x16x32xf32, #tpu.memory_space<vmem>>, vector<1x16x32xf32>
    %360 = vector.shape_cast %359 : vector<1x16x32xf32> to vector<16x32xf32>
    %361 = vector.shape_cast %346 : vector<16x32xf32> to vector<1x16x32xf32>
    tpu.vector_store %arg14[%c1_63, %c0_64, %c0_65], %361 {strides = array<i32>} : memref<2x16x32xf32, #tpu.memory_space<vmem>>, vector<1x16x32xf32>,
    %c0_66 = arith.constant 0 : index
    %c0_67 = arith.constant 0 : index
    %362 = vector.load %arg8[%c0_66, %c0_67] : memref<32x16xf32, #tpu.memory_space<vmem>>, vector<32x16xf32>
    %cst_68 = arith.constant dense<0.000000e+00> : vector<16x16xf32>
    %363 = tpu.matmul %349, %362, %cst_68 {dimension_numbers = #tpu.dot_dimension_numbers<[1], [0], [0], [1], [0, 0, 1, 1], [], []>} : vector<16x32xf32>, vector<32x16xf32>, vector<16x16xf32> -> vector<16x16xf32>
    %c0_69 = arith.constant 0 : index
    %c0_70 = arith.constant 0 : index
    %364 = vector.load %arg9[%c0_69, %c0_70] : memref<1x16xf32, #tpu.memory_space<vmem>>, vector<1x16xf32>
    %365 = vector.broadcast %364 : vector<1x16xf32> to vector<16x16xf32>
    %366 = arith.addf %363, %365 : vector<16x16xf32>
    %367 = arith.mulf %366, %366 : vector<16x16xf32>
    %cst_71 = arith.constant dense<0.000000e+00> : vector<16xf32>
    %368 = vector.multi_reduction <add>, %367, %cst_71 [1] : vector<16x16xf32> to vector<16xf32>
    %369 = vector.shape_cast %368 : vector<16xf32> to vector<16x1xf32>
    %cst_72 = arith.constant 9.99999996E-13 : f32
    %370 = vector.broadcast %cst_72 : f32 to vector<16x1xf32>
    %371 = arith.addf %369, %370 : vector<16x1xf32>
    %372 = math.rsqrt %371 : vector<16x1xf32>
    %373 = vector.broadcast %372 : vector<16x1xf32> to vector<16x16xf32>
    %374 = arith.mulf %366, %373 : vector<16x16xf32>
    %c0_73 = arith.constant 0 : index
    %c0_74 = arith.constant 0 : index
    %375 = vector.load %arg10[%c0_73, %c0_74] : memref<16x10xf32, #tpu.memory_space<vmem>>, vector<16x10xf32>
    %cst_75 = arith.constant dense<0.000000e+00> : vector<16x10xf32>
    %376 = tpu.matmul %374, %375, %cst_75 {dimension_numbers = #tpu.dot_dimension_numbers<[1], [0], [0], [1], [0, 0, 1, 1], [], []>} : vector<16x16xf32>, vector<16x10xf32>, vector<16x10xf32> -> vector<16x10xf32>
    %c0_76 = arith.constant 0 : index
    %c0_77 = arith.constant 0 : index
    %377 = vector.load %arg11[%c0_76, %c0_77] : memref<1x10xf32, #tpu.memory_space<vmem>>, vector<1x10xf32>
    %378 = vector.broadcast %377 : vector<1x10xf32> to vector<16x10xf32>
    %379 = arith.addf %376, %378 : vector<16x10xf32>
    %c0_78 = arith.constant 0 : index
    %c0_79 = arith.constant 0 : index
    %380 = vector.load %arg12[%c0_78, %c0_79] : memref<16x10xf32, #tpu.memory_space<vmem>>, vector<16x10xf32>
    tpu.vector_store %arg12[%c0_78, %c0_79], %379 {strides = array<i32>} : memref<16x10xf32, #tpu.memory_space<vmem>>, vector<16x10xf32>,
    return
  }
  func.func @transform_0(%arg0: i32) -> (i32, i32, i32) {
    %c0_i32 = arith.constant 0 : i32
    %c0_i32_0 = arith.constant 0 : i32
    %c0_i32_1 = arith.constant 0 : i32
    return %c0_i32, %arg0, %c0_i32_0 : i32, i32, i32
  }
  func.func @transform_1(%arg0: i32) -> (i32, i32) {
    %c0_i32 = arith.constant 0 : i32
    %c0_i32_0 = arith.constant 0 : i32
    %c0_i32_1 = arith.constant 0 : i32
    return %c0_i32, %c0_i32_0 : i32, i32
  }
  func.func @transform_2(%arg0: i32) -> (i32, i32) {
    %c0_i32 = arith.constant 0 : i32
    %c0_i32_0 = arith.constant 0 : i32
    %c0_i32_1 = arith.constant 0 : i32
    return %c0_i32, %c0_i32_0 : i32, i32
  }
  func.func @transform_3(%arg0: i32) -> (i32, i32) {
    %c0_i32 = arith.constant 0 : i32
    %c0_i32_0 = arith.constant 0 : i32
    %c0_i32_1 = arith.constant 0 : i32
    return %c0_i32, %c0_i32_0 : i32, i32
  }
  func.func @transform_4(%arg0: i32) -> (i32, i32) {
    %c0_i32 = arith.constant 0 : i32
    %c0_i32_0 = arith.constant 0 : i32
    %c0_i32_1 = arith.constant 0 : i32
    return %c0_i32, %c0_i32_0 : i32, i32
  }
  func.func @transform_5(%arg0: i32) -> (i32, i32) {
    %c0_i32 = arith.constant 0 : i32
    %c0_i32_0 = arith.constant 0 : i32
    %c0_i32_1 = arith.constant 0 : i32
    return %c0_i32, %c0_i32_0 : i32, i32
  }
  func.func @transform_6(%arg0: i32) -> (i32, i32) {
    %c0_i32 = arith.constant 0 : i32
    %c0_i32_0 = arith.constant 0 : i32
    %c0_i32_1 = arith.constant 0 : i32
    return %c0_i32, %c0_i32_0 : i32, i32
  }
  func.func @transform_7(%arg0: i32) -> (i32, i32) {
    %c0_i32 = arith.constant 0 : i32
    %c0_i32_0 = arith.constant 0 : i32
    %c0_i32_1 = arith.constant 0 : i32
    return %c0_i32, %c0_i32_0 : i32, i32
  }
  func.func @transform_8(%arg0: i32) -> (i32, i32) {
    %c0_i32 = arith.constant 0 : i32
    %c0_i32_0 = arith.constant 0 : i32
    %c0_i32_1 = arith.constant 0 : i32
    return %c0_i32, %c0_i32_0 : i32, i32
  }
  func.func @transform_9(%arg0: i32) -> (i32, i32) {
    %c0_i32 = arith.constant 0 : i32
    %c0_i32_0 = arith.constant 0 : i32
    %c0_i32_1 = arith.constant 0 : i32
    return %c0_i32, %c0_i32_0 : i32, i32
  }
  func.func @transform_10(%arg0: i32) -> (i32, i32) {
    %c0_i32 = arith.constant 0 : i32
    %c0_i32_0 = arith.constant 0 : i32
    %c0_i32_1 = arith.constant 0 : i32
    return %c0_i32, %c0_i32_0 : i32, i32
  }
  func.func @transform_11(%arg0: i32) -> (i32, i32) {
    %c0_i32 = arith.constant 0 : i32
    %c0_i32_0 = arith.constant 0 : i32
    return %arg0, %c0_i32 : i32, i32
  }
  func.func @transform_12(%arg0: i32) -> (i32, i32, i32) {
    %c0_i32 = arith.constant 0 : i32
    %c0_i32_0 = arith.constant 0 : i32
    %c0_i32_1 = arith.constant 0 : i32
    return %c0_i32, %arg0, %c0_i32_0 : i32, i32, i32
  }
  func.func @transform_13(%arg0: i32) -> (i32, i32, i32) {
    %c0_i32 = arith.constant 0 : i32
    %c0_i32_0 = arith.constant 0 : i32
    %c0_i32_1 = arith.constant 0 : i32
    return %c0_i32, %arg0, %c0_i32_0 : i32, i32, i32
  }
}

</mosaic_0001>

<llo_original>
// kernel: tpu_custom_call.1
$region0: #{tpu_custom_call.1}
  #allocation0 [shape = 'u32[]', space=smem, size = 0x4, offset = 0x4, fixed_abs, tag = 'smem constant byte address 0x4 - core index']
  #allocation1 [shape = 'u32[72,128]{1,0:T(1,128)}', space=vmem, size = 0x9000, scoped, tag = 'internal scratch']
  %s0 = inlined_call_operand.hbm [shape: f32[8,16,16], index: 0, kind: input, shape index: {}]
  %s1 = inlined_call_operand.hbm [shape: bf16[16,128], index: 1, kind: input, shape index: {}]
  %s2 = inlined_call_operand.vmem [shape: bf16[32,128], index: 2, kind: input, shape index: {}]
  %s3 = inlined_call_operand.vmem [shape: f32[1,128], index: 3, kind: input, shape index: {}]
  %s4 = inlined_call_operand.vmem [shape: bf16[32,128], index: 4, kind: input, shape index: {}]
  %s5 = inlined_call_operand.vmem [shape: bf16[32,128], index: 5, kind: input, shape index: {}]
  %s6 = inlined_call_operand.vmem [shape: f32[1,128], index: 6, kind: input, shape index: {}]
  %s7 = inlined_call_operand.vmem [shape: f32[32,16], index: 7, kind: input, shape index: {}]
  %s8 = inlined_call_operand.vmem [shape: f32[1,16], index: 8, kind: input, shape index: {}]
  %s9 = inlined_call_operand.hbm [shape: f32[16,10], index: 9, kind: input, shape index: {}]
  %s10 = inlined_call_operand.vmem [shape: f32[1,10], index: 10, kind: input, shape index: {}]
  %s11 = inlined_call_operand.hbm [shape: f32[16,10], index: 11, kind: output, shape index: {0}]
  %s12 = inlined_call_operand.hbm [shape: f32[2,16,32], index: 12, kind: output, shape index: {1}]
  %s13 = inlined_call_operand.hbm [shape: f32[2,16,32], index: 13, kind: output, shape index: {2}]
  %14 = xla_tuple %s11, %s12, %s13
  %s15 = sld [smem:[#allocation0]]
  $region82: #{tpu_custom_call.1} parent=0
    _
  %s17 = ssub.s32 1, %s15
  %s18 = scalar_select 0, %s17, %s15
  $region1: #{tpu_custom_call.1} parent=0
    #allocation2 [shape = 'u8[65536]{0}', space=vmem, size = 0x10000, scoped, tag = 'input window, operand 0, single buffered']
    #allocation3 [shape = 's32[1]{0}', space=sflag, size = 0x4, scoped, tag = 'scoped memory for tpu_custom_call.1']
    #allocation4 [shape = 's32[1]{0}', space=sflag, size = 0x4, scoped, tag = 'scoped memory for tpu_custom_call.1']
    #allocation5 [shape = 'u8[4096]{0}', space=vmem, size = 0x1000, scoped, tag = 'input window, operand 1, single buffered']
    #allocation6 [shape = 's32[1]{0}', space=sflag, size = 0x4, scoped, tag = 'scoped memory for tpu_custom_call.1']
    #allocation7 [shape = 'u8[8192]{0}', space=vmem, size = 0x2000, scoped, tag = 'input window, operand 9, single buffered']
    #allocation8 [shape = 'u8[8192]{0}', space=vmem, size = 0x2000, scoped, tag = 'output window, operand 0, single buffered']
    #allocation9 [shape = 'u8[16384]{0}', space=vmem, size = 0x4000, scoped, tag = 'output window, operand 1, single buffered']
    #allocation10 [shape = 's32[1]{0}', space=sflag, size = 0x4, scoped, tag = 'scoped memory for tpu_custom_call.1']
    #allocation11 [shape = 'u8[16384]{0}', space=vmem, size = 0x4000, scoped, tag = 'output window, operand 2, single buffered']
    %19 = vsyncpa [#allocation3], 0
    %20 = vsyncpa [#allocation6], 0
    %21 = vsyncpa [#allocation4], 0
    %22 = vsyncpa [#allocation10], 0
    // Predicated region
    $region2: #{tpu_custom_call.1} parent=1 // pred_check
      _
    $region3: #{tpu_custom_call.1} parent=1 // pred_check_branch
      %24 = sbr.rel (0) target = $region5
    $region4: #{tpu_custom_call.1} parent=1 // pred_region
      %26 = vsyncadd [#allocation3], 0
      %s27 = sshll.u32 %s0, 4
      %s28 = int_to_ptr.hbm [resolvable:$true] %s27
      %s29 = sshll.u32 [#allocation2], 4
      %s30 = int_to_ptr.vmem [resolvable:$true] %s29
      %35 = dma.hbm_to_vmem [thread:$0]  %s28, 2048, %s30, [#allocation3], 128, 128, 8
    $region5: #{tpu_custom_call.1} parent=1 // pred_fallthru
      _
    // Predicated region
    $region6: #{tpu_custom_call.1} parent=1 // pred_check
      _
    $region7: #{tpu_custom_call.1} parent=1 // pred_check_branch
      %37 = sbr.rel (0) target = $region9
    $region8: #{tpu_custom_call.1} parent=1 // pred_region
      %39 = vsyncadd [#allocation6], 0
      %s40 = sshll.u32 %s1, 4
      %s41 = int_to_ptr.hbm [resolvable:$true] %s40
      %s42 = sshll.u32 [#allocation5], 4
      %s43 = int_to_ptr.vmem [resolvable:$true] %s42
      %48 = dma.hbm_to_vmem [thread:$0]  %s41, 128, %s43, [#allocation6], 64, 64, 4
    $region9: #{tpu_custom_call.1} parent=1 // pred_fallthru
      _
    // Predicated region
    $region10: #{tpu_custom_call.1} parent=1 // pred_check
      _
    $region11: #{tpu_custom_call.1} parent=1 // pred_check_branch
      %50 = sbr.rel (0) target = $region13
    $region12: #{tpu_custom_call.1} parent=1 // pred_region
      _
    $region13: #{tpu_custom_call.1} parent=1 // pred_fallthru
      _
    // Predicated region
    $region14: #{tpu_custom_call.1} parent=1 // pred_check
      _
    $region15: #{tpu_custom_call.1} parent=1 // pred_check_branch
      %52 = sbr.rel (0) target = $region17
    $region16: #{tpu_custom_call.1} parent=1 // pred_region
      _
    $region17: #{tpu_custom_call.1} parent=1 // pred_fallthru
      _
    // Predicated region
    $region18: #{tpu_custom_call.1} parent=1 // pred_check
      _
    $region19: #{tpu_custom_call.1} parent=1 // pred_check_branch
      %54 = sbr.rel (0) target = $region21
    $region20: #{tpu_custom_call.1} parent=1 // pred_region
      _
    $region21: #{tpu_custom_call.1} parent=1 // pred_fallthru
      _
    // Predicated region
    $region22: #{tpu_custom_call.1} parent=1 // pred_check
      _
    $region23: #{tpu_custom_call.1} parent=1 // pred_check_branch
      %56 = sbr.rel (0) target = $region25
    $region24: #{tpu_custom_call.1} parent=1 // pred_region
      _
    $region25: #{tpu_custom_call.1} parent=1 // pred_fallthru
      _
    // Predicated region
    $region26: #{tpu_custom_call.1} parent=1 // pred_check
      _
    $region27: #{tpu_custom_call.1} parent=1 // pred_check_branch
      %58 = sbr.rel (0) target = $region29
    $region28: #{tpu_custom_call.1} parent=1 // pred_region
      _
    $region29: #{tpu_custom_call.1} parent=1 // pred_fallthru
      _
    // Predicated region
    $region30: #{tpu_custom_call.1} parent=1 // pred_check
      _
    $region31: #{tpu_custom_call.1} parent=1 // pred_check_branch
      %60 = sbr.rel (0) target = $region33
    $region32: #{tpu_custom_call.1} parent=1 // pred_region
      _
    $region33: #{tpu_custom_call.1} parent=1 // pred_fallthru
      _
    // Predicated region
    $region34: #{tpu_custom_call.1} parent=1 // pred_check
      _
    $region35: #{tpu_custom_call.1} parent=1 // pred_check_branch
      %62 = sbr.rel (0) target = $region37
    $region36: #{tpu_custom_call.1} parent=1 // pred_region
      _
    $region37: #{tpu_custom_call.1} parent=1 // pred_fallthru
      _
    // Predicated region
    $region38: #{tpu_custom_call.1} parent=1 // pred_check
      _
    $region39: #{tpu_custom_call.1} parent=1 // pred_check_branch
      %64 = sbr.rel (0) target = $region41
    $region40: #{tpu_custom_call.1} parent=1 // pred_region
      %66 = vsyncadd [#allocation6], 0
      %s67 = sshll.u32 %s9, 4
      %s68 = int_to_ptr.hbm [resolvable:$true] %s67
      %s69 = sshll.u32 [#allocation7], 4
      %s70 = int_to_ptr.vmem [resolvable:$true] %s69
      %75 = dma.hbm_to_vmem [thread:$0]  %s68, 256, %s70, [#allocation6], 128, 128, 8
    $region41: #{tpu_custom_call.1} parent=1 // pred_fallthru
      _
    // Predicated region
    $region42: #{tpu_custom_call.1} parent=1 // pred_check
      _
    $region43: #{tpu_custom_call.1} parent=1 // pred_check_branch
      %77 = sbr.rel (0) target = $region45
    $region44: #{tpu_custom_call.1} parent=1 // pred_region
      _
    $region45: #{tpu_custom_call.1} parent=1 // pred_fallthru
      _
    // Predicated region
    $region46: #{tpu_custom_call.1} parent=1 // pred_check
      _
    $region47: #{tpu_custom_call.1} parent=1 // pred_check_branch
      %79 = sbr.rel (0) target = $region49
    $region48: #{tpu_custom_call.1} parent=1 // pred_region
      %81 = dma.done [#allocation3], 2048
    $region49: #{tpu_custom_call.1} parent=1 // pred_fallthru
      _
    // Predicated region
    $region50: #{tpu_custom_call.1} parent=1 // pred_check
      _
    $region51: #{tpu_custom_call.1} parent=1 // pred_check_branch
      %83 = sbr.rel (0) target = $region53
    $region52: #{tpu_custom_call.1} parent=1 // pred_region
      %85 = dma.done [#allocation6], 128
    $region53: #{tpu_custom_call.1} parent=1 // pred_fallthru
      _
    // Predicated region
    $region54: #{tpu_custom_call.1} parent=1 // pred_check
      _
    $region55: #{tpu_custom_call.1} parent=1 // pred_check_branch
      %87 = sbr.rel (0) target = $region57
    $region56: #{tpu_custom_call.1} parent=1 // pred_region
      %89 = dma.done [#allocation6], 256
    $region57: #{tpu_custom_call.1} parent=1 // pred_fallthru
      _
    %v91 = vld [vmem:[#allocation2] sm:$0xff]
    %v92 = vld [vmem:[#allocation2 + $0x8] sm:$0xff]
    %v93 = vld [vmem:[#allocation2 + $0x10] sm:$0xff]
    %v94 = vld [vmem:[#allocation2 + $0x18] sm:$0xff]
    %v95 = vld [vmem:[#allocation2 + $0x20] sm:$0xff]
    %v96 = vld [vmem:[#allocation2 + $0x28] sm:$0xff]
    %v97 = vld [vmem:[#allocation2 + $0x30] sm:$0xff]
    %v98 = vld [vmem:[#allocation2 + $0x38] sm:$0xff]
    %v99 = vld [vmem:[#allocation2 + $0x40] sm:$0xff]
    %v100 = vld [vmem:[#allocation2 + $0x48] sm:$0xff]
    %v101 = vld [vmem:[#allocation2 + $0x50] sm:$0xff]
    %v102 = vld [vmem:[#allocation2 + $0x58] sm:$0xff]
    %v103 = vld [vmem:[#allocation2 + $0x60] sm:$0xff]
    %v104 = vld [vmem:[#allocation2 + $0x68] sm:$0xff]
    %v105 = vld [vmem:[#allocation2 + $0x70] sm:$0xff]
    %v106 = vld [vmem:[#allocation2 + $0x78] sm:$0xff]
    %v107 = vpack.c.bf16 %v92, %v91
    %v108 = vpack.c.bf16 %v94, %v93
    %v109 = vpack.c.bf16 %v96, %v95
    %v110 = vpack.c.bf16 %v98, %v97
    %v111 = vpack.c.bf16 %v100, %v99
    %v112 = vpack.c.bf16 %v102, %v101
    %v113 = vpack.c.bf16 %v104, %v103
    %v114 = vpack.c.bf16 %v106, %v105
    %v115 = vld [vmem:[#allocation5] sm:$0xf]
    %v116 = vld [vmem:[#allocation5 + $0x4] sm:$0xf]
    %v117 = vld [vmem:[%s3] sm:$0x1]
    %v119 = vperm.slane %v117, 0
    %v123 = vunpack.c.l.b16 %v115
    %v124 = vunpack.c.l.b16 %v116
    %v125 = vpack.c.b16 %v124, %v123
    %vm127 = vcmask 130048
    %v129 = vsel %vm127, %v107, 0
    %v132 = vsel %vm127, %v108, 0
    %v135 = vsel %vm127, %v109, 0
    %v138 = vsel %vm127, %v110, 0
    %v141 = vsel %vm127, %v111, 0
    %v144 = vsel %vm127, %v112, 0
    %v147 = vsel %vm127, %v113, 0
    %v150 = vsel %vm127, %v114, 0
    %152 = vmatpush.bf16.msra.mxu0 0
    %153 = vmatpush.bf16.msra.mxu0 0
    %154 = vmatpush.bf16.msra.mxu0 0
    %155 = vmatpush.bf16.msra.mxu0 0
    %156 = vmatpush.bf16.msra.mxu0 0
    %157 = vmatpush.bf16.msra.mxu0 0
    %158 = vmatpush.bf16.msra.mxu0 0
    %159 = vmatpush.bf16.msra.mxu0 %v125
    %160 = vmatmul.bf16.gmra.mxu0 %v129
    %v161 = vpop.f32.mrf.mxu0
    %v162 = vadd.f32 %v119, %v161
    %v163 = vpop.f32.mrf.mxu0
    %v164 = vadd.f32 %v119, %v163
    %165 = vmatmul.bf16.gmra.mxu0 %v132
    %v166 = vpop.f32.mrf.mxu0
    %v167 = vadd.f32 %v119, %v166
    %v168 = vpop.f32.mrf.mxu0
    %v169 = vadd.f32 %v119, %v168
    %170 = vmatmul.bf16.gmra.mxu0 %v135
    %v171 = vpop.f32.mrf.mxu0
    %v172 = vadd.f32 %v119, %v171
    %v173 = vpop.f32.mrf.mxu0
    %v174 = vadd.f32 %v119, %v173
    %175 = vmatmul.bf16.gmra.mxu0 %v138
    %v176 = vpop.f32.mrf.mxu0
    %v177 = vadd.f32 %v119, %v176
    %v178 = vpop.f32.mrf.mxu0
    %v179 = vadd.f32 %v119, %v178
    %180 = vmatmul.bf16.gmra.mxu0 %v141
    %v181 = vpop.f32.mrf.mxu0
    %v182 = vadd.f32 %v119, %v181
    %v183 = vpop.f32.mrf.mxu0
    %v184 = vadd.f32 %v119, %v183
    %185 = vmatmul.bf16.gmra.mxu0 %v144
    %v186 = vpop.f32.mrf.mxu0
    %v187 = vadd.f32 %v119, %v186
    %v188 = vpop.f32.mrf.mxu0
    %v189 = vadd.f32 %v119, %v188
    %190 = vmatmul.bf16.gmra.mxu0 %v147
    %v191 = vpop.f32.mrf.mxu0
    %v192 = vadd.f32 %v119, %v191
    %v193 = vpop.f32.mrf.mxu0
    %v194 = vadd.f32 %v119, %v193
    %195 = vmatmul.bf16.gmra.mxu0 %v150
    %v196 = vpop.f32.mrf.mxu0
    %v197 = vadd.f32 %v119, %v196
    %v198 = vpop.f32.mrf.mxu0
    %v199 = vadd.f32 %v119, %v198
    %200 = vdwg.mxu0
    %v201 = vld [vmem:[%s2] sm:$0xf]
    %v202 = vld [vmem:[%s2 + $0x4] sm:$0xf]
    %v203 = vld [vmem:[%s2 + $0x8] sm:$0xf]
    %v204 = vld [vmem:[%s2 + $0xc] sm:$0xf]
    %v205 = vld [vmem:[%s4] sm:$0xf]
    %v206 = vld [vmem:[%s4 + $0x4] sm:$0xf]
    %v207 = vld [vmem:[%s4 + $0x8] sm:$0xf]
    %v208 = vld [vmem:[%s4 + $0xc] sm:$0xf]
    %v209 = vld [vmem:[%s5] sm:$0xf]
    %v210 = vld [vmem:[%s5 + $0x4] sm:$0xf]
    %v211 = vld [vmem:[%s5 + $0x8] sm:$0xf]
    %v212 = vld [vmem:[%s5 + $0xc] sm:$0xf]
    %v213 = vld [vmem:[%s6] sm:$0x1]
    %v218 = vunpack.c.l.b16 %v201
    %v219 = vunpack.c.l.b16 %v202
    %v220 = vunpack.c.l.b16 %v203
    %v221 = vunpack.c.l.b16 %v204
    %v222 = vpack.c.b16 %v219, %v218
    %v223 = vpack.c.b16 %v221, %v220
    %vm226 = vcmask 261120
    %v228 = vsel %vm226, 0, 0
    %230 = vmatpush.bf16.msra.mxu0 0
    %231 = vmatpush.bf16.msra.mxu0 0
    %232 = vmatpush.bf16.msra.mxu0 0
    %233 = vmatpush.bf16.msra.mxu0 0
    %234 = vmatpush.bf16.msra.mxu0 0
    %235 = vmatpush.bf16.msra.mxu0 0
    %236 = vmatpush.bf16.msra.mxu0 %v223
    %237 = vmatpush.bf16.msra.mxu0 %v222
    %238 = vmatmul.bf16.gmra.mxu0 %v228
    %v239 = vpop.f32.mrf.mxu0
    %v240 = vadd.f32 0.0, %v239
    %v241 = vpop.f32.mrf.mxu0
    %v242 = vadd.f32 0.0, %v241
    %243 = vdwg.mxu0
    %v244 = vadd.f32 %v162, %v240
    %v245 = vadd.f32 %v164, %v242
    %v246 = vxor.u32 %v244, 2147483648
    %v247 = vxor.u32 %v245, 2147483648
    %v248 = vmul.f32 %v246, 1.442695
    %v249 = vpow.pop %v248
    %v250 = vmul.f32 %v247, 1.442695
    %v251 = vpow.pop %v250
    %v252 = vadd.f32 %v249, 1.0
    %v253 = vadd.f32 %v251, 1.0
    %v254 = vrcp.pop %v252
    %v255 = vmul.f32 %v252, %v254
    %v256 = vsub.f32 1.0, %v255
    %v257 = vmul.f32 %v254, %v256
    %v258 = vadd.f32 %v254, %v257
    %vm259 = vweird.f32 %v252
    %vm260 = vweird.f32 %v254
    %vm261 = vmor %vm259, %vm260
    %v262 = vsel %vm261, %v254, %v258
    %v263 = vand.u32 2147483647, %v252
    %vm264 = vcmp.eq.f32.partialorder %v263, 8.507059e+37
    %v265 = vand.u32 %v252, 2147483648
    %v266 = vor.u32 1.1754944e-38, %v265
    %v267 = vsel %vm264, %v266, %v262
    %v268 = vmul.f32 1.0, %v267
    %v269 = vrcp.pop %v253
    %v270 = vmul.f32 %v253, %v269
    %v271 = vsub.f32 1.0, %v270
    %v272 = vmul.f32 %v269, %v271
    %v273 = vadd.f32 %v269, %v272
    %vm274 = vweird.f32 %v253
    %vm275 = vweird.f32 %v269
    %vm276 = vmor %vm274, %vm275
    %v277 = vsel %vm276, %v269, %v273
    %v278 = vand.u32 2147483647, %v253
    %vm279 = vcmp.eq.f32.partialorder %v278, 8.507059e+37
    %v280 = vand.u32 %v253, 2147483648
    %v281 = vor.u32 1.1754944e-38, %v280
    %v282 = vsel %vm279, %v281, %v277
    %v283 = vmul.f32 1.0, %v282
    %v284 = vtanh.pop %v244
    %v285 = vtanh.pop %v245
    %v286 = vmul.f32 %v268, 0.0
    %v287 = vmul.f32 %v283, 0.0
    %290 = vrot.lane.b32.xlu0 %v284, 64
    %v291 = vpop.permute.xlu0 %290
    %292 = vrot.lane.b32.xlu0 %v285, 64
    %v293 = vpop.permute.xlu0 %292
    %v296 = vmul.f32 %v268, %v291
    %v297 = vmul.f32 %v283, %v293
    %300 = vrot.lane.b32.xlu0 %v296, 32
    %v301 = vpop.permute.xlu0 %300
    %302 = vrot.lane.b32.xlu0 %v297, 32
    %v303 = vpop.permute.xlu0 %302
    %v306 = vadd.f32 %v286, %v301
    %v307 = vadd.f32 %v287, %v303
    %v308 = vtanh.pop %v306
    %v309 = vtanh.pop %v307
    %312 = vrot.lane.b32.xlu0 %v308, 64
    %v313 = vpop.permute.xlu0 %312
    %314 = vrot.lane.b32.xlu0 %v309, 64
    %v315 = vpop.permute.xlu0 %314
    %v318 = vmul.f32 %v268, %v313
    %v319 = vmul.f32 %v283, %v315
    %v320 = vpack.c.bf16 %v319, %v318
    %322 = vrot.lane.b32.xlu0 %v320, 32
    %v323 = vpop.permute.xlu0 %322
    %v325 = vsel %vm226, %v323, 0
    %327 = vmatpush.bf16.msra.mxu0 0
    %328 = vmatpush.bf16.msra.mxu0 0
    %329 = vmatpush.bf16.msra.mxu0 0
    %330 = vmatpush.bf16.msra.mxu0 0
    %331 = vmatpush.bf16.msra.mxu0 0
    %332 = vmatpush.bf16.msra.mxu0 0
    %333 = vmatpush.bf16.msra.mxu0 %v223
    %334 = vmatpush.bf16.msra.mxu0 %v222
    %335 = vmatmul.bf16.gmra.mxu0 %v325
    %v336 = vpop.f32.mrf.mxu0
    %v337 = vadd.f32 0.0, %v336
    %v338 = vpop.f32.mrf.mxu0
    %v339 = vadd.f32 0.0, %v338
    %340 = vdwg.mxu0
    %v341 = vadd.f32 %v167, %v337
    %v342 = vadd.f32 %v169, %v339
    %v343 = vxor.u32 %v341, 2147483648
    %v344 = vxor.u32 %v342, 2147483648
    %v345 = vmul.f32 %v343, 1.442695
    %v346 = vpow.pop %v345
    %v347 = vmul.f32 %v344, 1.442695
    %v348 = vpow.pop %v347
    %v349 = vadd.f32 %v346, 1.0
    %v350 = vadd.f32 %v348, 1.0
    %v351 = vrcp.pop %v349
    %v352 = vmul.f32 %v349, %v351
    %v353 = vsub.f32 1.0, %v352
    %v354 = vmul.f32 %v351, %v353
    %v355 = vadd.f32 %v351, %v354
    %vm356 = vweird.f32 %v349
    %vm357 = vweird.f32 %v351
    %vm358 = vmor %vm356, %vm357
    %v359 = vsel %vm358, %v351, %v355
    %v360 = vand.u32 2147483647, %v349
    %vm361 = vcmp.eq.f32.partialorder %v360, 8.507059e+37
    %v362 = vand.u32 %v349, 2147483648
    %v363 = vor.u32 1.1754944e-38, %v362
    %v364 = vsel %vm361, %v363, %v359
    %v365 = vmul.f32 1.0, %v364
    %v366 = vrcp.pop %v350
    %v367 = vmul.f32 %v350, %v366
    %v368 = vsub.f32 1.0, %v367
    %v369 = vmul.f32 %v366, %v368
    %v370 = vadd.f32 %v366, %v369
    %vm371 = vweird.f32 %v350
    %vm372 = vweird.f32 %v366
    %vm373 = vmor %vm371, %vm372
    %v374 = vsel %vm373, %v366, %v370
    %v375 = vand.u32 2147483647, %v350
    %vm376 = vcmp.eq.f32.partialorder %v375, 8.507059e+37
    %v377 = vand.u32 %v350, 2147483648
    %v378 = vor.u32 1.1754944e-38, %v377
    %v379 = vsel %vm376, %v378, %v374
    %v380 = vmul.f32 1.0, %v379
    %v381 = vtanh.pop %v341
    %v382 = vtanh.pop %v342
    %v383 = vmul.f32 %v365, %v306
    %v384 = vmul.f32 %v380, %v307
    %387 = vrot.lane.b32.xlu0 %v381, 64
    %v388 = vpop.permute.xlu0 %387
    %389 = vrot.lane.b32.xlu0 %v382, 64
    %v390 = vpop.permute.xlu0 %389
    %v393 = vmul.f32 %v365, %v388
    %v394 = vmul.f32 %v380, %v390
    %397 = vrot.lane.b32.xlu0 %v393, 32
    %v398 = vpop.permute.xlu0 %397
    %399 = vrot.lane.b32.xlu0 %v394, 32
    %v400 = vpop.permute.xlu0 %399
    %v403 = vadd.f32 %v383, %v398
    %v404 = vadd.f32 %v384, %v400
    %v405 = vtanh.pop %v403
    %v406 = vtanh.pop %v404
    %409 = vrot.lane.b32.xlu0 %v405, 64
    %v410 = vpop.permute.xlu0 %409
    %411 = vrot.lane.b32.xlu0 %v406, 64
    %v412 = vpop.permute.xlu0 %411
    %v415 = vmul.f32 %v365, %v410
    %v416 = vmul.f32 %v380, %v412
    %v418 = vperm.slane %v213, 0
    %v424 = vunpack.c.l.b16 %v209
    %v425 = vunpack.c.l.b16 %v210
    %v426 = vunpack.c.l.b16 %v211
    %v427 = vunpack.c.l.b16 %v212
    %v428 = vpack.c.b16 %v425, %v424
    %v429 = vpack.c.b16 %v427, %v426
    %432 = vmatpush.bf16.msra.mxu0 0
    %433 = vmatpush.bf16.msra.mxu0 0
    %434 = vmatpush.bf16.msra.mxu0 0
    %435 = vmatpush.bf16.msra.mxu0 0
    %436 = vmatpush.bf16.msra.mxu0 0
    %437 = vmatpush.bf16.msra.mxu0 0
    %438 = vmatpush.bf16.msra.mxu0 %v429
    %439 = vmatpush.bf16.msra.mxu0 %v428
    %440 = vmatmul.bf16.gmra.mxu0 %v228
    %v441 = vpop.f32.mrf.mxu0
    %v442 = vadd.f32 %v418, %v441
    %v443 = vpop.f32.mrf.mxu0
    %v444 = vadd.f32 %v418, %v443
    %445 = vdwg.mxu0
    %v450 = vunpack.c.l.b16 %v205
    %v451 = vunpack.c.l.b16 %v206
    %v452 = vunpack.c.l.b16 %v207
    %v453 = vunpack.c.l.b16 %v208
    %v454 = vpack.c.b16 %v451, %v450
    %v455 = vpack.c.b16 %v453, %v452
    %458 = vmatpush.bf16.msra.mxu0 0
    %459 = vmatpush.bf16.msra.mxu0 0
    %460 = vmatpush.bf16.msra.mxu0 0
    %461 = vmatpush.bf16.msra.mxu0 0
    %462 = vmatpush.bf16.msra.mxu0 0
    %463 = vmatpush.bf16.msra.mxu0 0
    %464 = vmatpush.bf16.msra.mxu0 %v455
    %465 = vmatpush.bf16.msra.mxu0 %v454
    %466 = vmatmul.bf16.gmra.mxu0 %v325
    %v467 = vpop.f32.mrf.mxu0
    %v468 = vadd.f32 %v442, %v467
    %v469 = vpop.f32.mrf.mxu0
    %v470 = vadd.f32 %v444, %v469
    %471 = vdwg.mxu0
    %v472 = vxor.u32 %v468, 2147483648
    %v473 = vxor.u32 %v470, 2147483648
    %v474 = vmul.f32 %v472, 1.442695
    %v475 = vpow.pop %v474
    %v476 = vmul.f32 %v473, 1.442695
    %v477 = vpow.pop %v476
    %v478 = vadd.f32 %v475, 1.0
    %v479 = vadd.f32 %v477, 1.0
    %v480 = vrcp.pop %v478
    %v481 = vmul.f32 %v478, %v480
    %v482 = vsub.f32 1.0, %v481
    %v483 = vmul.f32 %v480, %v482
    %v484 = vadd.f32 %v480, %v483
    %vm485 = vweird.f32 %v478
    %vm486 = vweird.f32 %v480
    %vm487 = vmor %vm485, %vm486
    %v488 = vsel %vm487, %v480, %v484
    %v489 = vand.u32 2147483647, %v478
    %vm490 = vcmp.eq.f32.partialorder %v489, 8.507059e+37
    %v491 = vand.u32 %v478, 2147483648
    %v492 = vor.u32 1.1754944e-38, %v491
    %v493 = vsel %vm490, %v492, %v488
    %v494 = vmul.f32 1.0, %v493
    %v495 = vrcp.pop %v479
    %v496 = vmul.f32 %v479, %v495
    %v497 = vsub.f32 1.0, %v496
    %v498 = vmul.f32 %v495, %v497
    %v499 = vadd.f32 %v495, %v498
    %vm500 = vweird.f32 %v479
    %vm501 = vweird.f32 %v495
    %vm502 = vmor %vm500, %vm501
    %v503 = vsel %vm502, %v495, %v499
    %v504 = vand.u32 2147483647, %v479
    %vm505 = vcmp.eq.f32.partialorder %v504, 8.507059e+37
    %v506 = vand.u32 %v479, 2147483648
    %v507 = vor.u32 1.1754944e-38, %v506
    %v508 = vsel %vm505, %v507, %v503
    %v509 = vmul.f32 1.0, %v508
    %v510 = vtanh.pop %v468
    %v511 = vtanh.pop %v470
    %v512 = vmul.f32 %v494, 0.0
    %v513 = vmul.f32 %v509, 0.0
    %516 = vrot.lane.b32.xlu0 %v510, 64
    %v517 = vpop.permute.xlu0 %516
    %518 = vrot.lane.b32.xlu0 %v511, 64
    %v519 = vpop.permute.xlu0 %518
    %v522 = vmul.f32 %v494, %v517
    %v523 = vmul.f32 %v509, %v519
    %526 = vrot.lane.b32.xlu0 %v522, 32
    %v527 = vpop.permute.xlu0 %526
    %528 = vrot.lane.b32.xlu0 %v523, 32
    %v529 = vpop.permute.xlu0 %528
    %v532 = vadd.f32 %v512, %v527
    %v533 = vadd.f32 %v513, %v529
    %v534 = vtanh.pop %v532
    %v535 = vtanh.pop %v533
    %538 = vrot.lane.b32.xlu0 %v534, 64
    %v539 = vpop.permute.xlu0 %538
    %540 = vrot.lane.b32.xlu0 %v535, 64
    %v541 = vpop.permute.xlu0 %540
    %v544 = vmul.f32 %v494, %v539
    %v545 = vmul.f32 %v509, %v541
    %v546 = vpack.c.bf16 %v416, %v415
    %548 = vrot.lane.b32.xlu0 %v546, 32
    %v549 = vpop.permute.xlu0 %548
    %v551 = vsel %vm226, %v549, 0
    %553 = vmatpush.bf16.msra.mxu0 0
    %554 = vmatpush.bf16.msra.mxu0 0
    %555 = vmatpush.bf16.msra.mxu0 0
    %556 = vmatpush.bf16.msra.mxu0 0
    %557 = vmatpush.bf16.msra.mxu0 0
    %558 = vmatpush.bf16.msra.mxu0 0
    %559 = vmatpush.bf16.msra.mxu0 %v223
    %560 = vmatpush.bf16.msra.mxu0 %v222
    %561 = vmatmul.bf16.gmra.mxu0 %v551
    %v562 = vpop.f32.mrf.mxu0
    %v563 = vadd.f32 0.0, %v562
    %v564 = vpop.f32.mrf.mxu0
    %v565 = vadd.f32 0.0, %v564
    %566 = vdwg.mxu0
    %v567 = vadd.f32 %v172, %v563
    %v568 = vadd.f32 %v174, %v565
    %v569 = vxor.u32 %v567, 2147483648
    %v570 = vxor.u32 %v568, 2147483648
    %v571 = vmul.f32 %v569, 1.442695
    %v572 = vpow.pop %v571
    %v573 = vmul.f32 %v570, 1.442695
    %v574 = vpow.pop %v573
    %v575 = vadd.f32 %v572, 1.0
    %v576 = vadd.f32 %v574, 1.0
    %v577 = vrcp.pop %v575
    %v578 = vmul.f32 %v575, %v577
    %v579 = vsub.f32 1.0, %v578
    %v580 = vmul.f32 %v577, %v579
    %v581 = vadd.f32 %v577, %v580
    %vm582 = vweird.f32 %v575
    %vm583 = vweird.f32 %v577
    %vm584 = vmor %vm582, %vm583
    %v585 = vsel %vm584, %v577, %v581
    %v586 = vand.u32 2147483647, %v575
    %vm587 = vcmp.eq.f32.partialorder %v586, 8.507059e+37
    %v588 = vand.u32 %v575, 2147483648
    %v589 = vor.u32 1.1754944e-38, %v588
    %v590 = vsel %vm587, %v589, %v585
    %v591 = vmul.f32 1.0, %v590
    %v592 = vrcp.pop %v576
    %v593 = vmul.f32 %v576, %v592
    %v594 = vsub.f32 1.0, %v593
    %v595 = vmul.f32 %v592, %v594
    %v596 = vadd.f32 %v592, %v595
    %vm597 = vweird.f32 %v576
    %vm598 = vweird.f32 %v592
    %vm599 = vmor %vm597, %vm598
    %v600 = vsel %vm599, %v592, %v596
    %v601 = vand.u32 2147483647, %v576
    %vm602 = vcmp.eq.f32.partialorder %v601, 8.507059e+37
    %v603 = vand.u32 %v576, 2147483648
    %v604 = vor.u32 1.1754944e-38, %v603
    %v605 = vsel %vm602, %v604, %v600
    %v606 = vmul.f32 1.0, %v605
    %v607 = vtanh.pop %v567
    %v608 = vtanh.pop %v568
    %v609 = vmul.f32 %v591, %v403
    %v610 = vmul.f32 %v606, %v404
    %613 = vrot.lane.b32.xlu0 %v607, 64
    %v614 = vpop.permute.xlu0 %613
    %615 = vrot.lane.b32.xlu0 %v608, 64
    %v616 = vpop.permute.xlu0 %615
    %v619 = vmul.f32 %v591, %v614
    %v620 = vmul.f32 %v606, %v616
    %623 = vrot.lane.b32.xlu0 %v619, 32
    %v624 = vpop.permute.xlu0 %623
    %625 = vrot.lane.b32.xlu0 %v620, 32
    %v626 = vpop.permute.xlu0 %625
    %v629 = vadd.f32 %v609, %v624
    %v630 = vadd.f32 %v610, %v626
    %v631 = vtanh.pop %v629
    %v632 = vtanh.pop %v630
    %635 = vrot.lane.b32.xlu0 %v631, 64
    %v636 = vpop.permute.xlu0 %635
    %637 = vrot.lane.b32.xlu0 %v632, 64
    %v638 = vpop.permute.xlu0 %637
    %v641 = vmul.f32 %v591, %v636
    %v642 = vmul.f32 %v606, %v638
    %v643 = vpack.c.bf16 %v545, %v544
    %645 = vrot.lane.b32.xlu0 %v643, 32
    %v646 = vpop.permute.xlu0 %645
    %v648 = vsel %vm226, %v646, 0
    %650 = vmatpush.bf16.msra.mxu0 0
    %651 = vmatpush.bf16.msra.mxu0 0
    %652 = vmatpush.bf16.msra.mxu0 0
    %653 = vmatpush.bf16.msra.mxu0 0
    %654 = vmatpush.bf16.msra.mxu0 0
    %655 = vmatpush.bf16.msra.mxu0 0
    %656 = vmatpush.bf16.msra.mxu0 %v429
    %657 = vmatpush.bf16.msra.mxu0 %v428
    %658 = vmatmul.bf16.gmra.mxu0 %v648
    %v659 = vpop.f32.mrf.mxu0
    %v660 = vadd.f32 %v418, %v659
    %v661 = vpop.f32.mrf.mxu0
    %v662 = vadd.f32 %v418, %v661
    %663 = vdwg.mxu0
    %664 = vmatpush.bf16.msra.mxu0 0
    %665 = vmatpush.bf16.msra.mxu0 0
    %666 = vmatpush.bf16.msra.mxu0 0
    %667 = vmatpush.bf16.msra.mxu0 0
    %668 = vmatpush.bf16.msra.mxu0 0
    %669 = vmatpush.bf16.msra.mxu0 0
    %670 = vmatpush.bf16.msra.mxu0 %v455
    %671 = vmatpush.bf16.msra.mxu0 %v454
    %672 = vmatmul.bf16.gmra.mxu0 %v551
    %v673 = vpop.f32.mrf.mxu0
    %v674 = vadd.f32 %v660, %v673
    %v675 = vpop.f32.mrf.mxu0
    %v676 = vadd.f32 %v662, %v675
    %677 = vdwg.mxu0
    %v678 = vxor.u32 %v674, 2147483648
    %v679 = vxor.u32 %v676, 2147483648
    %v680 = vmul.f32 %v678, 1.442695
    %v681 = vpow.pop %v680
    %v682 = vmul.f32 %v679, 1.442695
    %v683 = vpow.pop %v682
    %v684 = vadd.f32 %v681, 1.0
    %v685 = vadd.f32 %v683, 1.0
    %v686 = vrcp.pop %v684
    %v687 = vmul.f32 %v684, %v686
    %v688 = vsub.f32 1.0, %v687
    %v689 = vmul.f32 %v686, %v688
    %v690 = vadd.f32 %v686, %v689
    %vm691 = vweird.f32 %v684
    %vm692 = vweird.f32 %v686
    %vm693 = vmor %vm691, %vm692
    %v694 = vsel %vm693, %v686, %v690
    %v695 = vand.u32 2147483647, %v684
    %vm696 = vcmp.eq.f32.partialorder %v695, 8.507059e+37
    %v697 = vand.u32 %v684, 2147483648
    %v698 = vor.u32 1.1754944e-38, %v697
    %v699 = vsel %vm696, %v698, %v694
    %v700 = vmul.f32 1.0, %v699
    %v701 = vrcp.pop %v685
    %v702 = vmul.f32 %v685, %v701
    %v703 = vsub.f32 1.0, %v702
    %v704 = vmul.f32 %v701, %v703
    %v705 = vadd.f32 %v701, %v704
    %vm706 = vweird.f32 %v685
    %vm707 = vweird.f32 %v701
    %vm708 = vmor %vm706, %vm707
    %v709 = vsel %vm708, %v701, %v705
    %v710 = vand.u32 2147483647, %v685
    %vm711 = vcmp.eq.f32.partialorder %v710, 8.507059e+37
    %v712 = vand.u32 %v685, 2147483648
    %v713 = vor.u32 1.1754944e-38, %v712
    %v714 = vsel %vm711, %v713, %v709
    %v715 = vmul.f32 1.0, %v714
    %v716 = vtanh.pop %v674
    %v717 = vtanh.pop %v676
    %v718 = vmul.f32 %v700, %v532
    %v719 = vmul.f32 %v715, %v533
    %722 = vrot.lane.b32.xlu0 %v716, 64
    %v723 = vpop.permute.xlu0 %722
    %724 = vrot.lane.b32.xlu0 %v717, 64
    %v725 = vpop.permute.xlu0 %724
    %v728 = vmul.f32 %v700, %v723
    %v729 = vmul.f32 %v715, %v725
    %732 = vrot.lane.b32.xlu0 %v728, 32
    %v733 = vpop.permute.xlu0 %732
    %734 = vrot.lane.b32.xlu0 %v729, 32
    %v735 = vpop.permute.xlu0 %734
    %v738 = vadd.f32 %v718, %v733
    %v739 = vadd.f32 %v719, %v735
    %v740 = vtanh.pop %v738
    %v741 = vtanh.pop %v739
    %744 = vrot.lane.b32.xlu0 %v740, 64
    %v745 = vpop.permute.xlu0 %744
    %746 = vrot.lane.b32.xlu0 %v741, 64
    %v747 = vpop.permute.xlu0 %746
    %v750 = vmul.f32 %v700, %v745
    %v751 = vmul.f32 %v715, %v747
    %v752 = vpack.c.bf16 %v642, %v641
    %754 = vrot.lane.b32.xlu0 %v752, 32
    %v755 = vpop.permute.xlu0 %754
    %v757 = vsel %vm226, %v755, 0
    %759 = vmatpush.bf16.msra.mxu0 0
    %760 = vmatpush.bf16.msra.mxu0 0
    %761 = vmatpush.bf16.msra.mxu0 0
    %762 = vmatpush.bf16.msra.mxu0 0
    %763 = vmatpush.bf16.msra.mxu0 0
    %764 = vmatpush.bf16.msra.mxu0 0
    %765 = vmatpush.bf16.msra.mxu0 %v223
    %766 = vmatpush.bf16.msra.mxu0 %v222
    %767 = vmatmul.bf16.gmra.mxu0 %v757
    %v768 = vpop.f32.mrf.mxu0
    %v769 = vadd.f32 0.0, %v768
    %v770 = vpop.f32.mrf.mxu0
    %v771 = vadd.f32 0.0, %v770
    %772 = vdwg.mxu0
    %v773 = vadd.f32 %v177, %v769
    %v774 = vadd.f32 %v179, %v771
    %v775 = vxor.u32 %v773, 2147483648
    %v776 = vxor.u32 %v774, 2147483648
    %v777 = vmul.f32 %v775, 1.442695
    %v778 = vpow.pop %v777
    %v779 = vmul.f32 %v776, 1.442695
    %v780 = vpow.pop %v779
    %v781 = vadd.f32 %v778, 1.0
    %v782 = vadd.f32 %v780, 1.0
    %v783 = vrcp.pop %v781
    %v784 = vmul.f32 %v781, %v783
    %v785 = vsub.f32 1.0, %v784
    %v786 = vmul.f32 %v783, %v785
    %v787 = vadd.f32 %v783, %v786
    %vm788 = vweird.f32 %v781
    %vm789 = vweird.f32 %v783
    %vm790 = vmor %vm788, %vm789
    %v791 = vsel %vm790, %v783, %v787
    %v792 = vand.u32 2147483647, %v781
    %vm793 = vcmp.eq.f32.partialorder %v792, 8.507059e+37
    %v794 = vand.u32 %v781, 2147483648
    %v795 = vor.u32 1.1754944e-38, %v794
    %v796 = vsel %vm793, %v795, %v791
    %v797 = vmul.f32 1.0, %v796
    %v798 = vrcp.pop %v782
    %v799 = vmul.f32 %v782, %v798
    %v800 = vsub.f32 1.0, %v799
    %v801 = vmul.f32 %v798, %v800
    %v802 = vadd.f32 %v798, %v801
    %vm803 = vweird.f32 %v782
    %vm804 = vweird.f32 %v798
    %vm805 = vmor %vm803, %vm804
    %v806 = vsel %vm805, %v798, %v802
    %v807 = vand.u32 2147483647, %v782
    %vm808 = vcmp.eq.f32.partialorder %v807, 8.507059e+37
    %v809 = vand.u32 %v782, 2147483648
    %v810 = vor.u32 1.1754944e-38, %v809
    %v811 = vsel %vm808, %v810, %v806
    %v812 = vmul.f32 1.0, %v811
    %v813 = vtanh.pop %v773
    %v814 = vtanh.pop %v774
    %v815 = vmul.f32 %v797, %v629
    %v816 = vmul.f32 %v812, %v630
    %819 = vrot.lane.b32.xlu0 %v813, 64
    %v820 = vpop.permute.xlu0 %819
    %821 = vrot.lane.b32.xlu0 %v814, 64
    %v822 = vpop.permute.xlu0 %821
    %v825 = vmul.f32 %v797, %v820
    %v826 = vmul.f32 %v812, %v822
    %829 = vrot.lane.b32.xlu0 %v825, 32
    %v830 = vpop.permute.xlu0 %829
    %831 = vrot.lane.b32.xlu0 %v826, 32
    %v832 = vpop.permute.xlu0 %831
    %v835 = vadd.f32 %v815, %v830
    %v836 = vadd.f32 %v816, %v832
    %v837 = vtanh.pop %v835
    %v838 = vtanh.pop %v836
    %841 = vrot.lane.b32.xlu0 %v837, 64
    %v842 = vpop.permute.xlu0 %841
    %843 = vrot.lane.b32.xlu0 %v838, 64
    %v844 = vpop.permute.xlu0 %843
    %v847 = vmul.f32 %v797, %v842
    %v848 = vmul.f32 %v812, %v844
    %v849 = vpack.c.bf16 %v751, %v750
    %851 = vrot.lane.b32.xlu0 %v849, 32
    %v852 = vpop.permute.xlu0 %851
    %v854 = vsel %vm226, %v852, 0
    %856 = vmatpush.bf16.msra.mxu0 0
    %857 = vmatpush.bf16.msra.mxu0 0
    %858 = vmatpush.bf16.msra.mxu0 0
    %859 = vmatpush.bf16.msra.mxu0 0
    %860 = vmatpush.bf16.msra.mxu0 0
    %861 = vmatpush.bf16.msra.mxu0 0
    %862 = vmatpush.bf16.msra.mxu0 %v429
    %863 = vmatpush.bf16.msra.mxu0 %v428
    %864 = vmatmul.bf16.gmra.mxu0 %v854
    %v865 = vpop.f32.mrf.mxu0
    %v866 = vadd.f32 %v418, %v865
    %v867 = vpop.f32.mrf.mxu0
    %v868 = vadd.f32 %v418, %v867
    %869 = vdwg.mxu0
    %870 = vmatpush.bf16.msra.mxu0 0
    %871 = vmatpush.bf16.msra.mxu0 0
    %872 = vmatpush.bf16.msra.mxu0 0
    %873 = vmatpush.bf16.msra.mxu0 0
    %874 = vmatpush.bf16.msra.mxu0 0
    %875 = vmatpush.bf16.msra.mxu0 0
    %876 = vmatpush.bf16.msra.mxu0 %v455
    %877 = vmatpush.bf16.msra.mxu0 %v454
    %878 = vmatmul.bf16.gmra.mxu0 %v757
    %v879 = vpop.f32.mrf.mxu0
    %v880 = vadd.f32 %v866, %v879
    %v881 = vpop.f32.mrf.mxu0
    %v882 = vadd.f32 %v868, %v881
    %883 = vdwg.mxu0
    %v884 = vxor.u32 %v880, 2147483648
    %v885 = vxor.u32 %v882, 2147483648
    %v886 = vmul.f32 %v884, 1.442695
    %v887 = vpow.pop %v886
    %v888 = vmul.f32 %v885, 1.442695
    %v889 = vpow.pop %v888
    %v890 = vadd.f32 %v887, 1.0
    %v891 = vadd.f32 %v889, 1.0
    %v892 = vrcp.pop %v890
    %v893 = vmul.f32 %v890, %v892
    %v894 = vsub.f32 1.0, %v893
    %v895 = vmul.f32 %v892, %v894
    %v896 = vadd.f32 %v892, %v895
    %vm897 = vweird.f32 %v890
    %vm898 = vweird.f32 %v892
    %vm899 = vmor %vm897, %vm898
    %v900 = vsel %vm899, %v892, %v896
    %v901 = vand.u32 2147483647, %v890
    %vm902 = vcmp.eq.f32.partialorder %v901, 8.507059e+37
    %v903 = vand.u32 %v890, 2147483648
    %v904 = vor.u32 1.1754944e-38, %v903
    %v905 = vsel %vm902, %v904, %v900
    %v906 = vmul.f32 1.0, %v905
    %v907 = vrcp.pop %v891
    %v908 = vmul.f32 %v891, %v907
    %v909 = vsub.f32 1.0, %v908
    %v910 = vmul.f32 %v907, %v909
    %v911 = vadd.f32 %v907, %v910
    %vm912 = vweird.f32 %v891
    %vm913 = vweird.f32 %v907
    %vm914 = vmor %vm912, %vm913
    %v915 = vsel %vm914, %v907, %v911
    %v916 = vand.u32 2147483647, %v891
    %vm917 = vcmp.eq.f32.partialorder %v916, 8.507059e+37
    %v918 = vand.u32 %v891, 2147483648
    %v919 = vor.u32 1.1754944e-38, %v918
    %v920 = vsel %vm917, %v919, %v915
    %v921 = vmul.f32 1.0, %v920
    %v922 = vtanh.pop %v880
    %v923 = vtanh.pop %v882
    %v924 = vmul.f32 %v906, %v738
    %v925 = vmul.f32 %v921, %v739
    %928 = vrot.lane.b32.xlu0 %v922, 64
    %v929 = vpop.permute.xlu0 %928
    %930 = vrot.lane.b32.xlu0 %v923, 64
    %v931 = vpop.permute.xlu0 %930
    %v934 = vmul.f32 %v906, %v929
    %v935 = vmul.f32 %v921, %v931
    %938 = vrot.lane.b32.xlu0 %v934, 32
    %v939 = vpop.permute.xlu0 %938
    %940 = vrot.lane.b32.xlu0 %v935, 32
    %v941 = vpop.permute.xlu0 %940
    %v944 = vadd.f32 %v924, %v939
    %v945 = vadd.f32 %v925, %v941
    %v946 = vtanh.pop %v944
    %v947 = vtanh.pop %v945
    %950 = vrot.lane.b32.xlu0 %v946, 64
    %v951 = vpop.permute.xlu0 %950
    %952 = vrot.lane.b32.xlu0 %v947, 64
    %v953 = vpop.permute.xlu0 %952
    %v956 = vmul.f32 %v906, %v951
    %v957 = vmul.f32 %v921, %v953
    %v958 = vpack.c.bf16 %v848, %v847
    %960 = vrot.lane.b32.xlu0 %v958, 32
    %v961 = vpop.permute.xlu0 %960
    %v963 = vsel %vm226, %v961, 0
    %965 = vmatpush.bf16.msra.mxu0 0
    %966 = vmatpush.bf16.msra.mxu0 0
    %967 = vmatpush.bf16.msra.mxu0 0
    %968 = vmatpush.bf16.msra.mxu0 0
    %969 = vmatpush.bf16.msra.mxu0 0
    %970 = vmatpush.bf16.msra.mxu0 0
    %971 = vmatpush.bf16.msra.mxu0 %v223
    %972 = vmatpush.bf16.msra.mxu0 %v222
    %973 = vmatmul.bf16.gmra.mxu0 %v963
    %v974 = vpop.f32.mrf.mxu0
    %v975 = vadd.f32 0.0, %v974
    %v976 = vpop.f32.mrf.mxu0
    %v977 = vadd.f32 0.0, %v976
    %978 = vdwg.mxu0
    %v979 = vadd.f32 %v182, %v975
    %v980 = vadd.f32 %v184, %v977
    %v981 = vxor.u32 %v979, 2147483648
    %v982 = vxor.u32 %v980, 2147483648
    %v983 = vmul.f32 %v981, 1.442695
    %v984 = vpow.pop %v983
    %v985 = vmul.f32 %v982, 1.442695
    %v986 = vpow.pop %v985
    %v987 = vadd.f32 %v984, 1.0
    %v988 = vadd.f32 %v986, 1.0
    %v989 = vrcp.pop %v987
    %v990 = vmul.f32 %v987, %v989
    %v991 = vsub.f32 1.0, %v990
    %v992 = vmul.f32 %v989, %v991
    %v993 = vadd.f32 %v989, %v992
    %vm994 = vweird.f32 %v987
    %vm995 = vweird.f32 %v989
    %vm996 = vmor %vm994, %vm995
    %v997 = vsel %vm996, %v989, %v993
    %v998 = vand.u32 2147483647, %v987
    %vm999 = vcmp.eq.f32.partialorder %v998, 8.507059e+37
    %v1000 = vand.u32 %v987, 2147483648
    %v1001 = vor.u32 1.1754944e-38, %v1000
    %v1002 = vsel %vm999, %v1001, %v997
    %v1003 = vmul.f32 1.0, %v1002
    %v1004 = vrcp.pop %v988
    %v1005 = vmul.f32 %v988, %v1004
    %v1006 = vsub.f32 1.0, %v1005
    %v1007 = vmul.f32 %v1004, %v1006
    %v1008 = vadd.f32 %v1004, %v1007
    %vm1009 = vweird.f32 %v988
    %vm1010 = vweird.f32 %v1004
    %vm1011 = vmor %vm1009, %vm1010
    %v1012 = vsel %vm1011, %v1004, %v1008
    %v1013 = vand.u32 2147483647, %v988
    %vm1014 = vcmp.eq.f32.partialorder %v1013, 8.507059e+37
    %v1015 = vand.u32 %v988, 2147483648
    %v1016 = vor.u32 1.1754944e-38, %v1015
    %v1017 = vsel %vm1014, %v1016, %v1012
    %v1018 = vmul.f32 1.0, %v1017
    %v1019 = vtanh.pop %v979
    %v1020 = vtanh.pop %v980
    %v1021 = vmul.f32 %v1003, %v835
    %v1022 = vmul.f32 %v1018, %v836
    %1025 = vrot.lane.b32.xlu0 %v1019, 64
    %v1026 = vpop.permute.xlu0 %1025
    %1027 = vrot.lane.b32.xlu0 %v1020, 64
    %v1028 = vpop.permute.xlu0 %1027
    %v1031 = vmul.f32 %v1003, %v1026
    %v1032 = vmul.f32 %v1018, %v1028
    %1035 = vrot.lane.b32.xlu0 %v1031, 32
    %v1036 = vpop.permute.xlu0 %1035
    %1037 = vrot.lane.b32.xlu0 %v1032, 32
    %v1038 = vpop.permute.xlu0 %1037
    %v1041 = vadd.f32 %v1021, %v1036
    %v1042 = vadd.f32 %v1022, %v1038
    %v1043 = vtanh.pop %v1041
    %v1044 = vtanh.pop %v1042
    %1047 = vrot.lane.b32.xlu0 %v1043, 64
    %v1048 = vpop.permute.xlu0 %1047
    %1049 = vrot.lane.b32.xlu0 %v1044, 64
    %v1050 = vpop.permute.xlu0 %1049
    %v1053 = vmul.f32 %v1003, %v1048
    %v1054 = vmul.f32 %v1018, %v1050
    %v1055 = vpack.c.bf16 %v957, %v956
    %1057 = vrot.lane.b32.xlu0 %v1055, 32
    %v1058 = vpop.permute.xlu0 %1057
    %v1060 = vsel %vm226, %v1058, 0
    %1062 = vmatpush.bf16.msra.mxu0 0
    %1063 = vmatpush.bf16.msra.mxu0 0
    %1064 = vmatpush.bf16.msra.mxu0 0
    %1065 = vmatpush.bf16.msra.mxu0 0
    %1066 = vmatpush.bf16.msra.mxu0 0
    %1067 = vmatpush.bf16.msra.mxu0 0
    %1068 = vmatpush.bf16.msra.mxu0 %v429
    %1069 = vmatpush.bf16.msra.mxu0 %v428
    %1070 = vmatmul.bf16.gmra.mxu0 %v1060
    %v1071 = vpop.f32.mrf.mxu0
    %v1072 = vadd.f32 %v418, %v1071
    %v1073 = vpop.f32.mrf.mxu0
    %v1074 = vadd.f32 %v418, %v1073
    %1075 = vdwg.mxu0
    %1076 = vmatpush.bf16.msra.mxu0 0
    %1077 = vmatpush.bf16.msra.mxu0 0
    %1078 = vmatpush.bf16.msra.mxu0 0
    %1079 = vmatpush.bf16.msra.mxu0 0
    %1080 = vmatpush.bf16.msra.mxu0 0
    %1081 = vmatpush.bf16.msra.mxu0 0
    %1082 = vmatpush.bf16.msra.mxu0 %v455
    %1083 = vmatpush.bf16.msra.mxu0 %v454
    %1084 = vmatmul.bf16.gmra.mxu0 %v963
    %v1085 = vpop.f32.mrf.mxu0
    %v1086 = vadd.f32 %v1072, %v1085
    %v1087 = vpop.f32.mrf.mxu0
    %v1088 = vadd.f32 %v1074, %v1087
    %1089 = vdwg.mxu0
    %v1090 = vxor.u32 %v1086, 2147483648
    %v1091 = vxor.u32 %v1088, 2147483648
    %v1092 = vmul.f32 %v1090, 1.442695
    %v1093 = vpow.pop %v1092
    %v1094 = vmul.f32 %v1091, 1.442695
    %v1095 = vpow.pop %v1094
    %v1096 = vadd.f32 %v1093, 1.0
    %v1097 = vadd.f32 %v1095, 1.0
    %v1098 = vrcp.pop %v1096
    %v1099 = vmul.f32 %v1096, %v1098
    %v1100 = vsub.f32 1.0, %v1099
    %v1101 = vmul.f32 %v1098, %v1100
    %v1102 = vadd.f32 %v1098, %v1101
    %vm1103 = vweird.f32 %v1096
    %vm1104 = vweird.f32 %v1098
    %vm1105 = vmor %vm1103, %vm1104
    %v1106 = vsel %vm1105, %v1098, %v1102
    %v1107 = vand.u32 2147483647, %v1096
    %vm1108 = vcmp.eq.f32.partialorder %v1107, 8.507059e+37
    %v1109 = vand.u32 %v1096, 2147483648
    %v1110 = vor.u32 1.1754944e-38, %v1109
    %v1111 = vsel %vm1108, %v1110, %v1106
    %v1112 = vmul.f32 1.0, %v1111
    %v1113 = vrcp.pop %v1097
    %v1114 = vmul.f32 %v1097, %v1113
    %v1115 = vsub.f32 1.0, %v1114
    %v1116 = vmul.f32 %v1113, %v1115
    %v1117 = vadd.f32 %v1113, %v1116
    %vm1118 = vweird.f32 %v1097
    %vm1119 = vweird.f32 %v1113
    %vm1120 = vmor %vm1118, %vm1119
    %v1121 = vsel %vm1120, %v1113, %v1117
    %v1122 = vand.u32 2147483647, %v1097
    %vm1123 = vcmp.eq.f32.partialorder %v1122, 8.507059e+37
    %v1124 = vand.u32 %v1097, 2147483648
    %v1125 = vor.u32 1.1754944e-38, %v1124
    %v1126 = vsel %vm1123, %v1125, %v1121
    %v1127 = vmul.f32 1.0, %v1126
    %v1128 = vtanh.pop %v1086
    %v1129 = vtanh.pop %v1088
    %v1130 = vmul.f32 %v1112, %v944
    %v1131 = vmul.f32 %v1127, %v945
    %1134 = vrot.lane.b32.xlu0 %v1128, 64
    %v1135 = vpop.permute.xlu0 %1134
    %1136 = vrot.lane.b32.xlu0 %v1129, 64
    %v1137 = vpop.permute.xlu0 %1136
    %v1140 = vmul.f32 %v1112, %v1135
    %v1141 = vmul.f32 %v1127, %v1137
    %1144 = vrot.lane.b32.xlu0 %v1140, 32
    %v1145 = vpop.permute.xlu0 %1144
    %1146 = vrot.lane.b32.xlu0 %v1141, 32
    %v1147 = vpop.permute.xlu0 %1146
    %v1150 = vadd.f32 %v1130, %v1145
    %v1151 = vadd.f32 %v1131, %v1147
    %v1152 = vtanh.pop %v1150
    %v1153 = vtanh.pop %v1151
    %1156 = vrot.lane.b32.xlu0 %v1152, 64
    %v1157 = vpop.permute.xlu0 %1156
    %1158 = vrot.lane.b32.xlu0 %v1153, 64
    %v1159 = vpop.permute.xlu0 %1158
    %v1162 = vmul.f32 %v1112, %v1157
    %v1163 = vmul.f32 %v1127, %v1159
    %v1164 = vpack.c.bf16 %v1054, %v1053
    %1166 = vrot.lane.b32.xlu0 %v1164, 32
    %v1167 = vpop.permute.xlu0 %1166
    %v1169 = vsel %vm226, %v1167, 0
    %1171 = vmatpush.bf16.msra.mxu0 0
    %1172 = vmatpush.bf16.msra.mxu0 0
    %1173 = vmatpush.bf16.msra.mxu0 0
    %1174 = vmatpush.bf16.msra.mxu0 0
    %1175 = vmatpush.bf16.msra.mxu0 0
    %1176 = vmatpush.bf16.msra.mxu0 0
    %1177 = vmatpush.bf16.msra.mxu0 %v223
    %1178 = vmatpush.bf16.msra.mxu0 %v222
    %1179 = vmatmul.bf16.gmra.mxu0 %v1169
    %v1180 = vpop.f32.mrf.mxu0
    %v1181 = vadd.f32 0.0, %v1180
    %v1182 = vpop.f32.mrf.mxu0
    %v1183 = vadd.f32 0.0, %v1182
    %1184 = vdwg.mxu0
    %v1185 = vadd.f32 %v187, %v1181
    %v1186 = vadd.f32 %v189, %v1183
    %v1187 = vxor.u32 %v1185, 2147483648
    %v1188 = vxor.u32 %v1186, 2147483648
    %v1189 = vmul.f32 %v1187, 1.442695
    %v1190 = vpow.pop %v1189
    %v1191 = vmul.f32 %v1188, 1.442695
    %v1192 = vpow.pop %v1191
    %v1193 = vadd.f32 %v1190, 1.0
    %v1194 = vadd.f32 %v1192, 1.0
    %v1195 = vrcp.pop %v1193
    %v1196 = vmul.f32 %v1193, %v1195
    %v1197 = vsub.f32 1.0, %v1196
    %v1198 = vmul.f32 %v1195, %v1197
    %v1199 = vadd.f32 %v1195, %v1198
    %vm1200 = vweird.f32 %v1193
    %vm1201 = vweird.f32 %v1195
    %vm1202 = vmor %vm1200, %vm1201
    %v1203 = vsel %vm1202, %v1195, %v1199
    %v1204 = vand.u32 2147483647, %v1193
    %vm1205 = vcmp.eq.f32.partialorder %v1204, 8.507059e+37
    %v1206 = vand.u32 %v1193, 2147483648
    %v1207 = vor.u32 1.1754944e-38, %v1206
    %v1208 = vsel %vm1205, %v1207, %v1203
    %v1209 = vmul.f32 1.0, %v1208
    %v1210 = vrcp.pop %v1194
    %v1211 = vmul.f32 %v1194, %v1210
    %v1212 = vsub.f32 1.0, %v1211
    %v1213 = vmul.f32 %v1210, %v1212
    %v1214 = vadd.f32 %v1210, %v1213
    %vm1215 = vweird.f32 %v1194
    %vm1216 = vweird.f32 %v1210
    %vm1217 = vmor %vm1215, %vm1216
    %v1218 = vsel %vm1217, %v1210, %v1214
    %v1219 = vand.u32 2147483647, %v1194
    %vm1220 = vcmp.eq.f32.partialorder %v1219, 8.507059e+37
    %v1221 = vand.u32 %v1194, 2147483648
    %v1222 = vor.u32 1.1754944e-38, %v1221
    %v1223 = vsel %vm1220, %v1222, %v1218
    %v1224 = vmul.f32 1.0, %v1223
    %v1225 = vtanh.pop %v1185
    %v1226 = vtanh.pop %v1186
    %v1227 = vmul.f32 %v1209, %v1041
    %v1228 = vmul.f32 %v1224, %v1042
    %1231 = vrot.lane.b32.xlu0 %v1225, 64
    %v1232 = vpop.permute.xlu0 %1231
    %1233 = vrot.lane.b32.xlu0 %v1226, 64
    %v1234 = vpop.permute.xlu0 %1233
    %v1237 = vmul.f32 %v1209, %v1232
    %v1238 = vmul.f32 %v1224, %v1234
    %1241 = vrot.lane.b32.xlu0 %v1237, 32
    %v1242 = vpop.permute.xlu0 %1241
    %1243 = vrot.lane.b32.xlu0 %v1238, 32
    %v1244 = vpop.permute.xlu0 %1243
    %v1247 = vadd.f32 %v1227, %v1242
    %v1248 = vadd.f32 %v1228, %v1244
    %v1249 = vtanh.pop %v1247
    %v1250 = vtanh.pop %v1248
    %1253 = vrot.lane.b32.xlu0 %v1249, 64
    %v1254 = vpop.permute.xlu0 %1253
    %1255 = vrot.lane.b32.xlu0 %v1250, 64
    %v1256 = vpop.permute.xlu0 %1255
    %v1259 = vmul.f32 %v1209, %v1254
    %v1260 = vmul.f32 %v1224, %v1256
    %v1261 = vpack.c.bf16 %v1163, %v1162
    %1263 = vrot.lane.b32.xlu0 %v1261, 32
    %v1264 = vpop.permute.xlu0 %1263
    %v1266 = vsel %vm226, %v1264, 0
    %1268 = vmatpush.bf16.msra.mxu0 0
    %1269 = vmatpush.bf16.msra.mxu0 0
    %1270 = vmatpush.bf16.msra.mxu0 0
    %1271 = vmatpush.bf16.msra.mxu0 0
    %1272 = vmatpush.bf16.msra.mxu0 0
    %1273 = vmatpush.bf16.msra.mxu0 0
    %1274 = vmatpush.bf16.msra.mxu0 %v429
    %1275 = vmatpush.bf16.msra.mxu0 %v428
    %1276 = vmatmul.bf16.gmra.mxu0 %v1266
    %v1277 = vpop.f32.mrf.mxu0
    %v1278 = vadd.f32 %v418, %v1277
    %v1279 = vpop.f32.mrf.mxu0
    %v1280 = vadd.f32 %v418, %v1279
    %1281 = vdwg.mxu0
    %1282 = vmatpush.bf16.msra.mxu0 0
    %1283 = vmatpush.bf16.msra.mxu0 0
    %1284 = vmatpush.bf16.msra.mxu0 0
    %1285 = vmatpush.bf16.msra.mxu0 0
    %1286 = vmatpush.bf16.msra.mxu0 0
    %1287 = vmatpush.bf16.msra.mxu0 0
    %1288 = vmatpush.bf16.msra.mxu0 %v455
    %1289 = vmatpush.bf16.msra.mxu0 %v454
    %1290 = vmatmul.bf16.gmra.mxu0 %v1169
    %v1291 = vpop.f32.mrf.mxu0
    %v1292 = vadd.f32 %v1278, %v1291
    %v1293 = vpop.f32.mrf.mxu0
    %v1294 = vadd.f32 %v1280, %v1293
    %1295 = vdwg.mxu0
    %v1296 = vxor.u32 %v1292, 2147483648
    %v1297 = vxor.u32 %v1294, 2147483648
    %v1298 = vmul.f32 %v1296, 1.442695
    %v1299 = vpow.pop %v1298
    %v1300 = vmul.f32 %v1297, 1.442695
    %v1301 = vpow.pop %v1300
    %v1302 = vadd.f32 %v1299, 1.0
    %v1303 = vadd.f32 %v1301, 1.0
    %v1304 = vrcp.pop %v1302
    %v1305 = vmul.f32 %v1302, %v1304
    %v1306 = vsub.f32 1.0, %v1305
    %v1307 = vmul.f32 %v1304, %v1306
    %v1308 = vadd.f32 %v1304, %v1307
    %vm1309 = vweird.f32 %v1302
    %vm1310 = vweird.f32 %v1304
    %vm1311 = vmor %vm1309, %vm1310
    %v1312 = vsel %vm1311, %v1304, %v1308
    %v1313 = vand.u32 2147483647, %v1302
    %vm1314 = vcmp.eq.f32.partialorder %v1313, 8.507059e+37
    %v1315 = vand.u32 %v1302, 2147483648
    %v1316 = vor.u32 1.1754944e-38, %v1315
    %v1317 = vsel %vm1314, %v1316, %v1312
    %v1318 = vmul.f32 1.0, %v1317
    %v1319 = vrcp.pop %v1303
    %v1320 = vmul.f32 %v1303, %v1319
    %v1321 = vsub.f32 1.0, %v1320
    %v1322 = vmul.f32 %v1319, %v1321
    %v1323 = vadd.f32 %v1319, %v1322
    %vm1324 = vweird.f32 %v1303
    %vm1325 = vweird.f32 %v1319
    %vm1326 = vmor %vm1324, %vm1325
    %v1327 = vsel %vm1326, %v1319, %v1323
    %v1328 = vand.u32 2147483647, %v1303
    %vm1329 = vcmp.eq.f32.partialorder %v1328, 8.507059e+37
    %v1330 = vand.u32 %v1303, 2147483648
    %v1331 = vor.u32 1.1754944e-38, %v1330
    %v1332 = vsel %vm1329, %v1331, %v1327
    %v1333 = vmul.f32 1.0, %v1332
    %v1334 = vtanh.pop %v1292
    %v1335 = vtanh.pop %v1294
    %v1336 = vmul.f32 %v1318, %v1150
    %v1337 = vmul.f32 %v1333, %v1151
    %1340 = vrot.lane.b32.xlu0 %v1334, 64
    %v1341 = vpop.permute.xlu0 %1340
    %1342 = vrot.lane.b32.xlu0 %v1335, 64
    %v1343 = vpop.permute.xlu0 %1342
    %v1346 = vmul.f32 %v1318, %v1341
    %v1347 = vmul.f32 %v1333, %v1343
    %1350 = vrot.lane.b32.xlu0 %v1346, 32
    %v1351 = vpop.permute.xlu0 %1350
    %1352 = vrot.lane.b32.xlu0 %v1347, 32
    %v1353 = vpop.permute.xlu0 %1352
    %v1356 = vadd.f32 %v1336, %v1351
    %v1357 = vadd.f32 %v1337, %v1353
    %v1358 = vtanh.pop %v1356
    %v1359 = vtanh.pop %v1357
    %1362 = vrot.lane.b32.xlu0 %v1358, 64
    %v1363 = vpop.permute.xlu0 %1362
    %1364 = vrot.lane.b32.xlu0 %v1359, 64
    %v1365 = vpop.permute.xlu0 %1364
    %v1368 = vmul.f32 %v1318, %v1363
    %v1369 = vmul.f32 %v1333, %v1365
    %v1370 = vpack.c.bf16 %v1260, %v1259
    %1372 = vrot.lane.b32.xlu0 %v1370, 32
    %v1373 = vpop.permute.xlu0 %1372
    %v1375 = vsel %vm226, %v1373, 0
    %1377 = vmatpush.bf16.msra.mxu0 0
    %1378 = vmatpush.bf16.msra.mxu0 0
    %1379 = vmatpush.bf16.msra.mxu0 0
    %1380 = vmatpush.bf16.msra.mxu0 0
    %1381 = vmatpush.bf16.msra.mxu0 0
    %1382 = vmatpush.bf16.msra.mxu0 0
    %1383 = vmatpush.bf16.msra.mxu0 %v223
    %1384 = vmatpush.bf16.msra.mxu0 %v222
    %1385 = vmatmul.bf16.gmra.mxu0 %v1375
    %v1386 = vpop.f32.mrf.mxu0
    %v1387 = vadd.f32 0.0, %v1386
    %v1388 = vpop.f32.mrf.mxu0
    %v1389 = vadd.f32 0.0, %v1388
    %1390 = vdwg.mxu0
    %v1391 = vadd.f32 %v192, %v1387
    %v1392 = vadd.f32 %v194, %v1389
    %v1393 = vxor.u32 %v1391, 2147483648
    %v1394 = vxor.u32 %v1392, 2147483648
    %v1395 = vmul.f32 %v1393, 1.442695
    %v1396 = vpow.pop %v1395
    %v1397 = vmul.f32 %v1394, 1.442695
    %v1398 = vpow.pop %v1397
    %v1399 = vadd.f32 %v1396, 1.0
    %v1400 = vadd.f32 %v1398, 1.0
    %v1401 = vrcp.pop %v1399
    %v1402 = vmul.f32 %v1399, %v1401
    %v1403 = vsub.f32 1.0, %v1402
    %v1404 = vmul.f32 %v1401, %v1403
    %v1405 = vadd.f32 %v1401, %v1404
    %vm1406 = vweird.f32 %v1399
    %vm1407 = vweird.f32 %v1401
    %vm1408 = vmor %vm1406, %vm1407
    %v1409 = vsel %vm1408, %v1401, %v1405
    %v1410 = vand.u32 2147483647, %v1399
    %vm1411 = vcmp.eq.f32.partialorder %v1410, 8.507059e+37
    %v1412 = vand.u32 %v1399, 2147483648
    %v1413 = vor.u32 1.1754944e-38, %v1412
    %v1414 = vsel %vm1411, %v1413, %v1409
    %v1415 = vmul.f32 1.0, %v1414
    %v1416 = vrcp.pop %v1400
    %v1417 = vmul.f32 %v1400, %v1416
    %v1418 = vsub.f32 1.0, %v1417
    %v1419 = vmul.f32 %v1416, %v1418
    %v1420 = vadd.f32 %v1416, %v1419
    %vm1421 = vweird.f32 %v1400
    %vm1422 = vweird.f32 %v1416
    %vm1423 = vmor %vm1421, %vm1422
    %v1424 = vsel %vm1423, %v1416, %v1420
    %v1425 = vand.u32 2147483647, %v1400
    %vm1426 = vcmp.eq.f32.partialorder %v1425, 8.507059e+37
    %v1427 = vand.u32 %v1400, 2147483648
    %v1428 = vor.u32 1.1754944e-38, %v1427
    %v1429 = vsel %vm1426, %v1428, %v1424
    %v1430 = vmul.f32 1.0, %v1429
    %v1431 = vtanh.pop %v1391
    %v1432 = vtanh.pop %v1392
    %v1433 = vmul.f32 %v1415, %v1247
    %v1434 = vmul.f32 %v1430, %v1248
    %1437 = vrot.lane.b32.xlu0 %v1431, 64
    %v1438 = vpop.permute.xlu0 %1437
    %1439 = vrot.lane.b32.xlu0 %v1432, 64
    %v1440 = vpop.permute.xlu0 %1439
    %v1443 = vmul.f32 %v1415, %v1438
    %v1444 = vmul.f32 %v1430, %v1440
    %1447 = vrot.lane.b32.xlu0 %v1443, 32
    %v1448 = vpop.permute.xlu0 %1447
    %1449 = vrot.lane.b32.xlu0 %v1444, 32
    %v1450 = vpop.permute.xlu0 %1449
    %v1453 = vadd.f32 %v1433, %v1448
    %v1454 = vadd.f32 %v1434, %v1450
    %v1455 = vtanh.pop %v1453
    %v1456 = vtanh.pop %v1454
    %1459 = vrot.lane.b32.xlu0 %v1455, 64
    %v1460 = vpop.permute.xlu0 %1459
    %1461 = vrot.lane.b32.xlu0 %v1456, 64
    %v1462 = vpop.permute.xlu0 %1461
    %v1465 = vmul.f32 %v1415, %v1460
    %v1466 = vmul.f32 %v1430, %v1462
    %v1467 = vpack.c.bf16 %v1369, %v1368
    %1469 = vrot.lane.b32.xlu0 %v1467, 32
    %v1470 = vpop.permute.xlu0 %1469
    %v1472 = vsel %vm226, %v1470, 0
    %1474 = vmatpush.bf16.msra.mxu0 0
    %1475 = vmatpush.bf16.msra.mxu0 0
    %1476 = vmatpush.bf16.msra.mxu0 0
    %1477 = vmatpush.bf16.msra.mxu0 0
    %1478 = vmatpush.bf16.msra.mxu0 0
    %1479 = vmatpush.bf16.msra.mxu0 0
    %1480 = vmatpush.bf16.msra.mxu0 %v429
    %1481 = vmatpush.bf16.msra.mxu0 %v428
    %1482 = vmatmul.bf16.gmra.mxu0 %v1472
    %v1483 = vpop.f32.mrf.mxu0
    %v1484 = vadd.f32 %v418, %v1483
    %v1485 = vpop.f32.mrf.mxu0
    %v1486 = vadd.f32 %v418, %v1485
    %1487 = vdwg.mxu0
    %1488 = vmatpush.bf16.msra.mxu0 0
    %1489 = vmatpush.bf16.msra.mxu0 0
    %1490 = vmatpush.bf16.msra.mxu0 0
    %1491 = vmatpush.bf16.msra.mxu0 0
    %1492 = vmatpush.bf16.msra.mxu0 0
    %1493 = vmatpush.bf16.msra.mxu0 0
    %1494 = vmatpush.bf16.msra.mxu0 %v455
    %1495 = vmatpush.bf16.msra.mxu0 %v454
    %1496 = vmatmul.bf16.gmra.mxu0 %v1375
    %v1497 = vpop.f32.mrf.mxu0
    %v1498 = vadd.f32 %v1484, %v1497
    %v1499 = vpop.f32.mrf.mxu0
    %v1500 = vadd.f32 %v1486, %v1499
    %1501 = vdwg.mxu0
    %v1502 = vxor.u32 %v1498, 2147483648
    %v1503 = vxor.u32 %v1500, 2147483648
    %v1504 = vmul.f32 %v1502, 1.442695
    %v1505 = vpow.pop %v1504
    %v1506 = vmul.f32 %v1503, 1.442695
    %v1507 = vpow.pop %v1506
    %v1508 = vadd.f32 %v1505, 1.0
    %v1509 = vadd.f32 %v1507, 1.0
    %v1510 = vrcp.pop %v1508
    %v1511 = vmul.f32 %v1508, %v1510
    %v1512 = vsub.f32 1.0, %v1511
    %v1513 = vmul.f32 %v1510, %v1512
    %v1514 = vadd.f32 %v1510, %v1513
    %vm1515 = vweird.f32 %v1508
    %vm1516 = vweird.f32 %v1510
    %vm1517 = vmor %vm1515, %vm1516
    %v1518 = vsel %vm1517, %v1510, %v1514
    %v1519 = vand.u32 2147483647, %v1508
    %vm1520 = vcmp.eq.f32.partialorder %v1519, 8.507059e+37
    %v1521 = vand.u32 %v1508, 2147483648
    %v1522 = vor.u32 1.1754944e-38, %v1521
    %v1523 = vsel %vm1520, %v1522, %v1518
    %v1524 = vmul.f32 1.0, %v1523
    %v1525 = vrcp.pop %v1509
    %v1526 = vmul.f32 %v1509, %v1525
    %v1527 = vsub.f32 1.0, %v1526
    %v1528 = vmul.f32 %v1525, %v1527
    %v1529 = vadd.f32 %v1525, %v1528
    %vm1530 = vweird.f32 %v1509
    %vm1531 = vweird.f32 %v1525
    %vm1532 = vmor %vm1530, %vm1531
    %v1533 = vsel %vm1532, %v1525, %v1529
    %v1534 = vand.u32 2147483647, %v1509
    %vm1535 = vcmp.eq.f32.partialorder %v1534, 8.507059e+37
    %v1536 = vand.u32 %v1509, 2147483648
    %v1537 = vor.u32 1.1754944e-38, %v1536
    %v1538 = vsel %vm1535, %v1537, %v1533
    %v1539 = vmul.f32 1.0, %v1538
    %v1540 = vtanh.pop %v1498
    %v1541 = vtanh.pop %v1500
    %v1542 = vmul.f32 %v1524, %v1356
    %v1543 = vmul.f32 %v1539, %v1357
    %1546 = vrot.lane.b32.xlu0 %v1540, 64
    %v1547 = vpop.permute.xlu0 %1546
    %1548 = vrot.lane.b32.xlu0 %v1541, 64
    %v1549 = vpop.permute.xlu0 %1548
    %v1552 = vmul.f32 %v1524, %v1547
    %v1553 = vmul.f32 %v1539, %v1549
    %1556 = vrot.lane.b32.xlu0 %v1552, 32
    %v1557 = vpop.permute.xlu0 %1556
    %1558 = vrot.lane.b32.xlu0 %v1553, 32
    %v1559 = vpop.permute.xlu0 %1558
    %v1562 = vadd.f32 %v1542, %v1557
    %v1563 = vadd.f32 %v1543, %v1559
    %v1564 = vtanh.pop %v1562
    %v1565 = vtanh.pop %v1563
    %1568 = vrot.lane.b32.xlu0 %v1564, 64
    %v1569 = vpop.permute.xlu0 %1568
    %1570 = vrot.lane.b32.xlu0 %v1565, 64
    %v1571 = vpop.permute.xlu0 %1570
    %v1574 = vmul.f32 %v1524, %v1569
    %v1575 = vmul.f32 %v1539, %v1571
    %v1576 = vpack.c.bf16 %v1466, %v1465
    %1578 = vrot.lane.b32.xlu0 %v1576, 32
    %v1579 = vpop.permute.xlu0 %1578
    %v1581 = vsel %vm226, %v1579, 0
    %1583 = vmatpush.bf16.msra.mxu0 0
    %1584 = vmatpush.bf16.msra.mxu0 0
    %1585 = vmatpush.bf16.msra.mxu0 0
    %1586 = vmatpush.bf16.msra.mxu0 0
    %1587 = vmatpush.bf16.msra.mxu0 0
    %1588 = vmatpush.bf16.msra.mxu0 0
    %1589 = vmatpush.bf16.msra.mxu0 %v223
    %1590 = vmatpush.bf16.msra.mxu0 %v222
    %1591 = vmatmul.bf16.gmra.mxu0 %v1581
    %v1592 = vpop.f32.mrf.mxu0
    %v1593 = vadd.f32 0.0, %v1592
    %v1594 = vpop.f32.mrf.mxu0
    %v1595 = vadd.f32 0.0, %v1594
    %1596 = vdwg.mxu0
    %v1597 = vadd.f32 %v197, %v1593
    %v1598 = vadd.f32 %v199, %v1595
    %v1599 = vxor.u32 %v1597, 2147483648
    %v1600 = vxor.u32 %v1598, 2147483648
    %v1601 = vmul.f32 %v1599, 1.442695
    %v1602 = vpow.pop %v1601
    %v1603 = vmul.f32 %v1600, 1.442695
    %v1604 = vpow.pop %v1603
    %v1605 = vadd.f32 %v1602, 1.0
    %v1606 = vadd.f32 %v1604, 1.0
    %v1607 = vrcp.pop %v1605
    %v1608 = vmul.f32 %v1605, %v1607
    %v1609 = vsub.f32 1.0, %v1608
    %v1610 = vmul.f32 %v1607, %v1609
    %v1611 = vadd.f32 %v1607, %v1610
    %vm1612 = vweird.f32 %v1605
    %vm1613 = vweird.f32 %v1607
    %vm1614 = vmor %vm1612, %vm1613
    %v1615 = vsel %vm1614, %v1607, %v1611
    %v1616 = vand.u32 2147483647, %v1605
    %vm1617 = vcmp.eq.f32.partialorder %v1616, 8.507059e+37
    %v1618 = vand.u32 %v1605, 2147483648
    %v1619 = vor.u32 1.1754944e-38, %v1618
    %v1620 = vsel %vm1617, %v1619, %v1615
    %v1621 = vmul.f32 1.0, %v1620
    %v1622 = vrcp.pop %v1606
    %v1623 = vmul.f32 %v1606, %v1622
    %v1624 = vsub.f32 1.0, %v1623
    %v1625 = vmul.f32 %v1622, %v1624
    %v1626 = vadd.f32 %v1622, %v1625
    %vm1627 = vweird.f32 %v1606
    %vm1628 = vweird.f32 %v1622
    %vm1629 = vmor %vm1627, %vm1628
    %v1630 = vsel %vm1629, %v1622, %v1626
    %v1631 = vand.u32 2147483647, %v1606
    %vm1632 = vcmp.eq.f32.partialorder %v1631, 8.507059e+37
    %v1633 = vand.u32 %v1606, 2147483648
    %v1634 = vor.u32 1.1754944e-38, %v1633
    %v1635 = vsel %vm1632, %v1634, %v1630
    %v1636 = vmul.f32 1.0, %v1635
    %v1637 = vtanh.pop %v1597
    %v1638 = vtanh.pop %v1598
    %v1639 = vmul.f32 %v1621, %v1453
    %v1640 = vmul.f32 %v1636, %v1454
    %1643 = vrot.lane.b32.xlu0 %v1637, 64
    %v1644 = vpop.permute.xlu0 %1643
    %1645 = vrot.lane.b32.xlu0 %v1638, 64
    %v1646 = vpop.permute.xlu0 %1645
    %v1649 = vmul.f32 %v1621, %v1644
    %v1650 = vmul.f32 %v1636, %v1646
    %1653 = vrot.lane.b32.xlu0 %v1649, 32
    %v1654 = vpop.permute.xlu0 %1653
    %1655 = vrot.lane.b32.xlu0 %v1650, 32
    %v1656 = vpop.permute.xlu0 %1655
    %v1659 = vadd.f32 %v1639, %v1654
    %v1660 = vadd.f32 %v1640, %v1656
    %v1661 = vtanh.pop %v1659
    %v1662 = vtanh.pop %v1660
    %1665 = vrot.lane.b32.xlu0 %v1661, 64
    %v1666 = vpop.permute.xlu0 %1665
    %1667 = vrot.lane.b32.xlu0 %v1662, 64
    %v1668 = vpop.permute.xlu0 %1667
    %v1671 = vmul.f32 %v1621, %v1666
    %v1672 = vmul.f32 %v1636, %v1668
    %v1673 = vpack.c.bf16 %v1575, %v1574
    %1675 = vrot.lane.b32.xlu0 %v1673, 32
    %v1676 = vpop.permute.xlu0 %1675
    %v1678 = vsel %vm226, %v1676, 0
    %1680 = vmatpush.bf16.msra.mxu0 0
    %1681 = vmatpush.bf16.msra.mxu0 0
    %1682 = vmatpush.bf16.msra.mxu0 0
    %1683 = vmatpush.bf16.msra.mxu0 0
    %1684 = vmatpush.bf16.msra.mxu0 0
    %1685 = vmatpush.bf16.msra.mxu0 0
    %1686 = vmatpush.bf16.msra.mxu0 %v429
    %1687 = vmatpush.bf16.msra.mxu0 %v428
    %1688 = vmatmul.bf16.gmra.mxu0 %v1678
    %v1689 = vpop.f32.mrf.mxu0
    %v1690 = vadd.f32 %v418, %v1689
    %v1691 = vpop.f32.mrf.mxu0
    %v1692 = vadd.f32 %v418, %v1691
    %1693 = vdwg.mxu0
    %1694 = vmatpush.bf16.msra.mxu0 0
    %1695 = vmatpush.bf16.msra.mxu0 0
    %1696 = vmatpush.bf16.msra.mxu0 0
    %1697 = vmatpush.bf16.msra.mxu0 0
    %1698 = vmatpush.bf16.msra.mxu0 0
    %1699 = vmatpush.bf16.msra.mxu0 0
    %1700 = vmatpush.bf16.msra.mxu0 %v455
    %1701 = vmatpush.bf16.msra.mxu0 %v454
    %1702 = vmatmul.bf16.gmra.mxu0 %v1581
    %v1703 = vpop.f32.mrf.mxu0
    %v1704 = vadd.f32 %v1690, %v1703
    %v1705 = vpop.f32.mrf.mxu0
    %v1706 = vadd.f32 %v1692, %v1705
    %1707 = vdwg.mxu0
    %v1708 = vxor.u32 %v1704, 2147483648
    %v1709 = vxor.u32 %v1706, 2147483648
    %v1710 = vmul.f32 %v1708, 1.442695
    %v1711 = vpow.pop %v1710
    %v1712 = vmul.f32 %v1709, 1.442695
    %v1713 = vpow.pop %v1712
    %v1714 = vadd.f32 %v1711, 1.0
    %v1715 = vadd.f32 %v1713, 1.0
    %v1716 = vrcp.pop %v1714
    %v1717 = vmul.f32 %v1714, %v1716
    %v1718 = vsub.f32 1.0, %v1717
    %v1719 = vmul.f32 %v1716, %v1718
    %v1720 = vadd.f32 %v1716, %v1719
    %vm1721 = vweird.f32 %v1714
    %vm1722 = vweird.f32 %v1716
    %vm1723 = vmor %vm1721, %vm1722
    %v1724 = vsel %vm1723, %v1716, %v1720
    %v1725 = vand.u32 2147483647, %v1714
    %vm1726 = vcmp.eq.f32.partialorder %v1725, 8.507059e+37
    %v1727 = vand.u32 %v1714, 2147483648
    %v1728 = vor.u32 1.1754944e-38, %v1727
    %v1729 = vsel %vm1726, %v1728, %v1724
    %v1730 = vmul.f32 1.0, %v1729
    %v1731 = vrcp.pop %v1715
    %v1732 = vmul.f32 %v1715, %v1731
    %v1733 = vsub.f32 1.0, %v1732
    %v1734 = vmul.f32 %v1731, %v1733
    %v1735 = vadd.f32 %v1731, %v1734
    %vm1736 = vweird.f32 %v1715
    %vm1737 = vweird.f32 %v1731
    %vm1738 = vmor %vm1736, %vm1737
    %v1739 = vsel %vm1738, %v1731, %v1735
    %v1740 = vand.u32 2147483647, %v1715
    %vm1741 = vcmp.eq.f32.partialorder %v1740, 8.507059e+37
    %v1742 = vand.u32 %v1715, 2147483648
    %v1743 = vor.u32 1.1754944e-38, %v1742
    %v1744 = vsel %vm1741, %v1743, %v1739
    %v1745 = vmul.f32 1.0, %v1744
    %v1746 = vtanh.pop %v1704
    %v1747 = vtanh.pop %v1706
    %v1748 = vmul.f32 %v1730, %v1562
    %v1749 = vmul.f32 %v1745, %v1563
    %1752 = vrot.lane.b32.xlu0 %v1746, 64
    %v1753 = vpop.permute.xlu0 %1752
    %1754 = vrot.lane.b32.xlu0 %v1747, 64
    %v1755 = vpop.permute.xlu0 %1754
    %v1758 = vmul.f32 %v1730, %v1753
    %v1759 = vmul.f32 %v1745, %v1755
    %1762 = vrot.lane.b32.xlu0 %v1758, 32
    %v1763 = vpop.permute.xlu0 %1762
    %1764 = vrot.lane.b32.xlu0 %v1759, 32
    %v1765 = vpop.permute.xlu0 %1764
    %v1768 = vadd.f32 %v1748, %v1763
    %v1769 = vadd.f32 %v1749, %v1765
    %v1770 = vtanh.pop %v1768
    %v1771 = vtanh.pop %v1769
    %1774 = vrot.lane.b32.xlu0 %v1770, 64
    %v1775 = vpop.permute.xlu0 %1774
    %1776 = vrot.lane.b32.xlu0 %v1771, 64
    %v1777 = vpop.permute.xlu0 %1776
    %v1780 = vmul.f32 %v1730, %v1775
    %v1781 = vmul.f32 %v1745, %v1777
    %v1782 = vpack.c.bf16 %v1781, %v1780
    %1784 = vrot.lane.b32.xlu0 %v1782, 32
    %v1785 = vpop.permute.xlu0 %1784
    %v1787 = vsel %vm226, %v1785, 0
    %1789 = vmatpush.bf16.msra.mxu0 0
    %1790 = vmatpush.bf16.msra.mxu0 0
    %1791 = vmatpush.bf16.msra.mxu0 0
    %1792 = vmatpush.bf16.msra.mxu0 0
    %1793 = vmatpush.bf16.msra.mxu0 0
    %1794 = vmatpush.bf16.msra.mxu0 0
    %1795 = vmatpush.bf16.msra.mxu0 %v429
    %1796 = vmatpush.bf16.msra.mxu0 %v428
    %1797 = vmatmul.bf16.gmra.mxu0 %v1787
    %v1798 = vpop.f32.mrf.mxu0
    %v1799 = vadd.f32 %v418, %v1798
    %v1800 = vpop.f32.mrf.mxu0
    %v1801 = vadd.f32 %v418, %v1800
    %1802 = vdwg.mxu0
    %v1803 = vpack.c.bf16 %v1672, %v1671
    %1805 = vrot.lane.b32.xlu0 %v1803, 32
    %v1806 = vpop.permute.xlu0 %1805
    %v1808 = vsel %vm226, %v1806, 0
    %1810 = vmatpush.bf16.msra.mxu0 0
    %1811 = vmatpush.bf16.msra.mxu0 0
    %1812 = vmatpush.bf16.msra.mxu0 0
    %1813 = vmatpush.bf16.msra.mxu0 0
    %1814 = vmatpush.bf16.msra.mxu0 0
    %1815 = vmatpush.bf16.msra.mxu0 0
    %1816 = vmatpush.bf16.msra.mxu0 %v455
    %1817 = vmatpush.bf16.msra.mxu0 %v454
    %1818 = vmatmul.bf16.gmra.mxu0 %v1808
    %v1819 = vpop.f32.mrf.mxu0
    %v1820 = vadd.f32 %v1799, %v1819
    %v1821 = vpop.f32.mrf.mxu0
    %v1822 = vadd.f32 %v1801, %v1821
    %1823 = vdwg.mxu0
    %v1824 = vxor.u32 %v1820, 2147483648
    %v1825 = vxor.u32 %v1822, 2147483648
    %v1826 = vmul.f32 %v1824, 1.442695
    %v1827 = vpow.pop %v1826
    %v1828 = vmul.f32 %v1825, 1.442695
    %v1829 = vpow.pop %v1828
    %v1830 = vadd.f32 %v1827, 1.0
    %v1831 = vadd.f32 %v1829, 1.0
    %v1832 = vrcp.pop %v1830
    %v1833 = vmul.f32 %v1830, %v1832
    %v1834 = vsub.f32 1.0, %v1833
    %v1835 = vmul.f32 %v1832, %v1834
    %v1836 = vadd.f32 %v1832, %v1835
    %vm1837 = vweird.f32 %v1830
    %vm1838 = vweird.f32 %v1832
    %vm1839 = vmor %vm1837, %vm1838
    %v1840 = vsel %vm1839, %v1832, %v1836
    %v1841 = vand.u32 2147483647, %v1830
    %vm1842 = vcmp.eq.f32.partialorder %v1841, 8.507059e+37
    %v1843 = vand.u32 %v1830, 2147483648
    %v1844 = vor.u32 1.1754944e-38, %v1843
    %v1845 = vsel %vm1842, %v1844, %v1840
    %v1846 = vmul.f32 1.0, %v1845
    %v1847 = vrcp.pop %v1831
    %v1848 = vmul.f32 %v1831, %v1847
    %v1849 = vsub.f32 1.0, %v1848
    %v1850 = vmul.f32 %v1847, %v1849
    %v1851 = vadd.f32 %v1847, %v1850
    %vm1852 = vweird.f32 %v1831
    %vm1853 = vweird.f32 %v1847
    %vm1854 = vmor %vm1852, %vm1853
    %v1855 = vsel %vm1854, %v1847, %v1851
    %v1856 = vand.u32 2147483647, %v1831
    %vm1857 = vcmp.eq.f32.partialorder %v1856, 8.507059e+37
    %v1858 = vand.u32 %v1831, 2147483648
    %v1859 = vor.u32 1.1754944e-38, %v1858
    %v1860 = vsel %vm1857, %v1859, %v1855
    %v1861 = vmul.f32 1.0, %v1860
    %v1862 = vtanh.pop %v1820
    %v1863 = vtanh.pop %v1822
    %v1864 = vmul.f32 %v1846, %v1768
    %v1865 = vmul.f32 %v1861, %v1769
    %1868 = vrot.lane.b32.xlu0 %v1862, 64
    %v1869 = vpop.permute.xlu0 %1868
    %1870 = vrot.lane.b32.xlu0 %v1863, 64
    %v1871 = vpop.permute.xlu0 %1870
    %v1874 = vmul.f32 %v1846, %v1869
    %v1875 = vmul.f32 %v1861, %v1871
    %1878 = vrot.lane.b32.xlu0 %v1874, 32
    %v1879 = vpop.permute.xlu0 %1878
    %1880 = vrot.lane.b32.xlu0 %v1875, 32
    %v1881 = vpop.permute.xlu0 %1880
    %v1884 = vadd.f32 %v1864, %v1879
    %v1885 = vadd.f32 %v1865, %v1881
    %v1886 = vtanh.pop %v1884
    %v1887 = vtanh.pop %v1885
    %1890 = vrot.lane.b32.xlu0 %v1886, 64
    %v1891 = vpop.permute.xlu0 %1890
    %1892 = vrot.lane.b32.xlu0 %v1887, 64
    %v1893 = vpop.permute.xlu0 %1892
    %v1896 = vmul.f32 %v1846, %v1891
    %v1897 = vmul.f32 %v1861, %v1893
    %1900 = vrot.lane.b32.xlu0 %v1671, 32
    %v1901 = vpop.permute.xlu0 %1900
    %1902 = vrot.lane.b32.xlu0 %v1672, 32
    %v1903 = vpop.permute.xlu0 %1902
    %1906 = vst.msk [vmem:[#allocation9] sm:$0xff] %vm226, %v1901
    %1907 = vst.msk [vmem:[#allocation9 + $0x8] sm:$0xff] %vm226, %v1903
    %1910 = vrot.lane.b32.xlu0 %v1896, 32
    %v1911 = vpop.permute.xlu0 %1910
    %1912 = vrot.lane.b32.xlu0 %v1897, 32
    %v1913 = vpop.permute.xlu0 %1912
    %s1916 = scalar_lea.vmem [#allocation9], 16
    %1917 = vst.msk [vmem:[%s1916] sm:$0xff] %vm226, %v1911
    %1918 = vst.msk [vmem:[%s1916 + $0x8] sm:$0xff] %vm226, %v1913
    %1921 = vrot.lane.b32.xlu0 %v1659, 96
    %v1922 = vpop.permute.xlu0 %1921
    %1923 = vrot.lane.b32.xlu0 %v1660, 96
    %v1924 = vpop.permute.xlu0 %1923
    %1927 = vst.msk [vmem:[#allocation11] sm:$0xff] %vm226, %v1922
    %1928 = vst.msk [vmem:[#allocation11 + $0x8] sm:$0xff] %vm226, %v1924
    %1931 = vrot.lane.b32.xlu0 %v1884, 96
    %v1932 = vpop.permute.xlu0 %1931
    %1933 = vrot.lane.b32.xlu0 %v1885, 96
    %v1934 = vpop.permute.xlu0 %1933
    %s1937 = scalar_lea.vmem [#allocation11], 16
    %1938 = vst.msk [vmem:[%s1937] sm:$0xff] %vm226, %v1932
    %1939 = vst.msk [vmem:[%s1937 + $0x8] sm:$0xff] %vm226, %v1934
    %v1940 = vld [vmem:[%s7] sm:$0xff]
    %v1941 = vld [vmem:[%s7 + $0x8] sm:$0xff]
    %v1942 = vld [vmem:[%s7 + $0x10] sm:$0xff]
    %v1943 = vld [vmem:[%s7 + $0x18] sm:$0xff]
    %v1944 = vld [vmem:[%s8] sm:$0x1]
    %v1946 = vperm.slane %v1944, 0
    %v1948 = vsel %vm226, %v1911, 0
    %v1950 = vsel %vm226, %v1913, 0
    %1952 = vmatpush.msra.mxu0 0.0
    %1953 = vmatpush.msra.mxu0 0.0
    %1954 = vmatpush.msra.mxu0 0.0
    %1955 = vmatpush.msra.mxu0 0.0
    %1956 = vmatpush.msra.mxu0 0.0
    %1957 = vmatpush.msra.mxu0 0.0
    %1958 = vmatpush.msra.mxu0 0.0
    %1959 = vmatpush.msra.mxu0 0.0
    %1960 = vmatpush.msra.mxu0 0.0
    %1961 = vmatpush.msra.mxu0 0.0
    %1962 = vmatpush.msra.mxu0 0.0
    %1963 = vmatpush.msra.mxu0 0.0
    %1964 = vmatpush.msra.mxu0 %v1943
    %1965 = vmatpush.msra.mxu0 %v1942
    %1966 = vmatpush.msra.mxu0 %v1941
    %1967 = vmatpush.msra.mxu0 %v1940
    %1968 = vmatmul.f32.gmra.mxu0 %v1948
    %v1969 = vpop.f32.mrf.mxu0
    %v1970 = vadd.f32 %v1946, %v1969
    %1971 = vmatmul.f32.gmra.mxu0 %v1950
    %v1972 = vpop.f32.mrf.mxu0
    %v1973 = vadd.f32 %v1946, %v1972
    %1974 = vdwg.mxu0
    %v1975 = vmul.f32 %v1970, %v1970
    %v1976 = vmul.f32 %v1973, %v1973
    %v1977 = vsel %vm127, %v1975, 0.0
    %1978 = vadd.xlane.f32.xlu0 %v1977
    %v1979 = vpop.xlane.xlu0 %1978
    %v1980 = vsel %vm127, %v1976, 0.0
    %1981 = vadd.xlane.f32.xlu0 %v1980
    %v1982 = vpop.xlane.xlu0 %1981
    %v1983 = vadd.f32 %v1979, 1e-12
    %v1984 = vadd.f32 %v1982, 1e-12
    %v1985 = vrsqrt.pop %v1983
    %v1986 = vmul.f32 %v1985, %v1983
    %v1987 = vmul.f32 %v1986, %v1985
    %v1988 = vmul.f32 0.5, %v1987
    %v1989 = vsub.f32 1.5, %v1988
    %v1990 = vmul.f32 %v1985, %v1989
    %vm1991 = vweird.f32 %v1983
    %vm1992 = vweird.f32 %v1985
    %vm1993 = vmor %vm1991, %vm1992
    %v1994 = vsel %vm1993, %v1985, %v1990
    %v1995 = vrsqrt.pop %v1984
    %v1996 = vmul.f32 %v1995, %v1984
    %v1997 = vmul.f32 %v1996, %v1995
    %v1998 = vmul.f32 0.5, %v1997
    %v1999 = vsub.f32 1.5, %v1998
    %v2000 = vmul.f32 %v1995, %v1999
    %vm2001 = vweird.f32 %v1984
    %vm2002 = vweird.f32 %v1995
    %vm2003 = vmor %vm2001, %vm2002
    %v2004 = vsel %vm2003, %v1995, %v2000
    %v2005 = vmul.f32 %v1970, %v1994
    %v2006 = vmul.f32 %v1973, %v2004
    %v2007 = vld [vmem:[#allocation7] sm:$0xff]
    %v2008 = vld [vmem:[#allocation7 + $0x8] sm:$0xff]
    %v2009 = vld [vmem:[%s10] sm:$0x1]
    %v2011 = vperm.slane %v2009, 0
    %v2014 = vsel %vm127, %v2005, 0
    %v2017 = vsel %vm127, %v2006, 0
    %2019 = vmatpush.msra.mxu0 0.0
    %2020 = vmatpush.msra.mxu0 0.0
    %2021 = vmatpush.msra.mxu0 0.0
    %2022 = vmatpush.msra.mxu0 0.0
    %2023 = vmatpush.msra.mxu0 0.0
    %2024 = vmatpush.msra.mxu0 0.0
    %2025 = vmatpush.msra.mxu0 0.0
    %2026 = vmatpush.msra.mxu0 0.0
    %2027 = vmatpush.msra.mxu0 0.0
    %2028 = vmatpush.msra.mxu0 0.0
    %2029 = vmatpush.msra.mxu0 0.0
    %2030 = vmatpush.msra.mxu0 0.0
    %2031 = vmatpush.msra.mxu0 0.0
    %2032 = vmatpush.msra.mxu0 0.0
    %2033 = vmatpush.msra.mxu0 %v2008
    %2034 = vmatpush.msra.mxu0 %v2007
    %2035 = vmatmul.f32.gmra.mxu0 %v2014
    %v2036 = vpop.f32.mrf.mxu0
    %v2037 = vadd.f32 %v2011, %v2036
    %2038 = vmatmul.f32.gmra.mxu0 %v2017
    %v2039 = vpop.f32.mrf.mxu0
    %v2040 = vadd.f32 %v2011, %v2039
    %2041 = vdwg.mxu0
    %vm2042 = vcmask 80896
    %2043 = vst.msk [vmem:[#allocation8] sm:$0xff] %vm2042, %v2037
    %2044 = vst.msk [vmem:[#allocation8 + $0x8] sm:$0xff] %vm2042, %v2040
    // Predicated region
    $region58: #{tpu_custom_call.1} parent=1 // pred_check
      _
    $region59: #{tpu_custom_call.1} parent=1 // pred_check_branch
      %2046 = sbr.rel (0) target = $region61
    $region60: #{tpu_custom_call.1} parent=1 // pred_region
      %2048 = vsyncadd [#allocation4], 0
      %s2049 = sshll.u32 [#allocation8], 4
      %s2050 = int_to_ptr.vmem [resolvable:$true] %s2049
      %s2051 = sshll.u32 %s11, 4
      %s2052 = int_to_ptr.hbm [resolvable:$true] %s2051
      %2057 = dma.vmem_to_hbm [thread:$0]  %s2050, 256, %s2052, [#allocation4], 128, 128, 8
    $region61: #{tpu_custom_call.1} parent=1 // pred_fallthru
      _
    // Predicated region
    $region62: #{tpu_custom_call.1} parent=1 // pred_check
      _
    $region63: #{tpu_custom_call.1} parent=1 // pred_check_branch
      %2059 = sbr.rel (0) target = $region65
    $region64: #{tpu_custom_call.1} parent=1 // pred_region
      %2061 = vsyncadd [#allocation10], 0
      %s2062 = sshll.u32 [#allocation9], 4
      %s2063 = int_to_ptr.vmem [resolvable:$true] %s2062
      %s2064 = sshll.u32 %s12, 4
      %s2065 = int_to_ptr.hbm [resolvable:$true] %s2064
      %2070 = dma.vmem_to_hbm [thread:$0]  %s2063, 512, %s2065, [#allocation10], 128, 128, 8
    $region65: #{tpu_custom_call.1} parent=1 // pred_fallthru
      _
    // Predicated region
    $region66: #{tpu_custom_call.1} parent=1 // pred_check
      _
    $region67: #{tpu_custom_call.1} parent=1 // pred_check_branch
      %2072 = sbr.rel (0) target = $region69
    $region68: #{tpu_custom_call.1} parent=1 // pred_region
      %2074 = vsyncadd [#allocation10], 0
      %s2075 = sshll.u32 [#allocation11], 4
      %s2076 = int_to_ptr.vmem [resolvable:$true] %s2075
      %s2077 = sshll.u32 %s13, 4
      %s2078 = int_to_ptr.hbm [resolvable:$true] %s2077
      %2083 = dma.vmem_to_hbm [thread:$0]  %s2076, 512, %s2078, [#allocation10], 128, 128, 8
    $region69: #{tpu_custom_call.1} parent=1 // pred_fallthru
      _
    // Predicated region
    $region70: #{tpu_custom_call.1} parent=1 // pred_check
      _
    $region71: #{tpu_custom_call.1} parent=1 // pred_check_branch
      %2085 = sbr.rel (0) target = $region73
    $region72: #{tpu_custom_call.1} parent=1 // pred_region
      %2087 = dma.done [#allocation4], 256
    $region73: #{tpu_custom_call.1} parent=1 // pred_fallthru
      _
    // Predicated region
    $region74: #{tpu_custom_call.1} parent=1 // pred_check
      _
    $region75: #{tpu_custom_call.1} parent=1 // pred_check_branch
      %2089 = sbr.rel (0) target = $region77
    $region76: #{tpu_custom_call.1} parent=1 // pred_region
      %2091 = dma.done [#allocation10], 512
    $region77: #{tpu_custom_call.1} parent=1 // pred_fallthru
      _
    // Predicated region
    $region78: #{tpu_custom_call.1} parent=1 // pred_check
      _
    $region79: #{tpu_custom_call.1} parent=1 // pred_check_branch
      %2093 = sbr.rel (0) target = $region81
    $region80: #{tpu_custom_call.1} parent=1 // pred_region
      %2095 = dma.done [#allocation10], 512
    $region81: #{tpu_custom_call.1} parent=1 // pred_fallthru
      _
    %2096 = vsyncpa [#allocation3], 1
    %2097 = vsyncpa [#allocation6], 1
    %2098 = vsyncpa [#allocation4], 1
    %2099 = vsyncpa [#allocation10], 1

</llo_original>
